<compile_context>
chip_gen: v5e
topology: v5e:2x2
jax: 0.10.0
libtpu: 0.0.40
codegen_flags: <defaults>
</compile_context>

<pallas_src>
import numpy as np
import jax
import jax.numpy as jnp
from jax import lax
from jax.experimental import pallas as pl
from jax.experimental.pallas import tpu as pltpu


# ----------------------------- config ----------------------------------------
class Cfg:
    LOSS_MODE = "general"        # anything != 'pretrain' -> robust (L1 + eps)**q loss
    LOSS_WEIGHTS = [0.32, 0.08]  # one weight per pyramid scale
    LOSS_Q = 0.4
    LOSS_EPSILON = 0.01
    LOSS_KERNEL_SIZE = 5
    LOSS_SIGMA = 1.0
    LOSS_LAMDA = 1.0


# -------------------- deterministic weight-matrix construction ----------------
def gauss_1d(kernel_size, sigma):
    """1-D normalized gaussian; the reference 2-D kernel is exactly outer(g, g)."""
    s3 = 3.0 * sigma
    X = np.linspace(-s3, s3, kernel_size)
    g = np.exp(-(X ** 2) / (2.0 * sigma ** 2))
    return (g / g.sum()).astype(np.float64)


def gauss_band_matrix(n, g1d):
    """Banded Toeplitz matrix implementing zero-padded 1-D cross-correlation
    (kernel is symmetric, so it equals convolution / F.conv2d with padding)."""
    K = g1d.shape[0]
    p = K // 2
    M = np.zeros((n, n), dtype=np.float64)
    for i in range(n):
        for k in range(K):
            j = i + k - p
            if 0 <= j < n:
                M[i, j] += g1d[k]
    return M.astype(np.float32)


def bilinear_matrix(out_size, in_size):
    """1-D bilinear resize weights, PyTorch align_corners=False semantics."""
    M = np.zeros((out_size, in_size), dtype=np.float64)
    scale = in_size / out_size
    for i in range(out_size):
        src = (i + 0.5) * scale - 0.5
        src = max(src, 0.0)
        i0 = min(int(np.floor(src)), in_size - 1)
        i1 = min(i0 + 1, in_size - 1)
        t = src - i0
        M[i, i0] += 1.0 - t
        M[i, i1] += t
    return M.astype(np.float32)


def area_matrix(out_size, in_size):
    """1-D 'area' (adaptive average pool) resize weights."""
    M = np.zeros((out_size, in_size), dtype=np.float64)
    for i in range(out_size):
        start = (i * in_size) // out_size
        end = -((-(i + 1) * in_size) // out_size)  # ceil((i+1)*in/out)
        M[i, start:end] = 1.0 / (end - start)
    return M.astype(np.float32)


# ------------------------- capability / budget helpers -------------------------
_BUFFERED_OK = None


def _buffered_single_ok():
    """Probe (outside jit) whether pipeline_mode=pl.Buffered(1) lowers on this
    jax/libtpu.  Constant weight matrices are single-buffered only if it does."""
    global _BUFFERED_OK
    if _BUFFERED_OK is not None:
        return _BUFFERED_OK
    try:
        def k(c_ref, x_ref, o_ref):
            o_ref[...] = x_ref[...] + c_ref[...]

        f = pl.pallas_call(
            k,
            out_shape=jax.ShapeDtypeStruct((2, 8, 128), jnp.float32),
            grid=(2,),
            in_specs=[
                pl.BlockSpec((8, 128), lambda b: (0, 0), pipeline_mode=pl.Buffered(1)),
                pl.BlockSpec((None, 8, 128), lambda b: (b, 0, 0)),
            ],
            out_specs=pl.BlockSpec((None, 8, 128), lambda b: (b, 0, 0)),
            compiler_params=pltpu.CompilerParams(dimension_semantics=("parallel",)),
        )
        jax.block_until_ready(f(jnp.ones((8, 128), jnp.float32),
                                jnp.zeros((2, 8, 128), jnp.float32)))
        _BUFFERED_OK = True
    except Exception:
        _BUFFERED_OK = False
    return _BUFFERED_OK


def _vmem_limit_bytes():
    """Per-generation VMEM budget: ~40 MiB on 64-MiB parts (v7x), up to ~96 MiB
    on 128-MiB parts (v5e/v6e).  Falls back to 48 MiB if the query fails."""
    try:
        cap = int(pltpu.get_tpu_info().vmem_capacity_bytes)
    except Exception:
        return 48 * 1024 * 1024
    if cap <= 64 * 1024 * 1024:
        return 40 * 1024 * 1024
    return min(96 * 1024 * 1024, (cap * 3) // 4)


def _row_tile(H):
    """Row-chunk size for the H-tiled realEPE upsample: largest power-of-two
    divisor of H that is <= 256 (whole H when H <= 256 or no usable divisor)."""
    if H <= 256:
        return H
    t = 1
    while H % (t * 2) == 0 and t * 2 <= 256:
        t *= 2
    return t if t >= 8 else H


# ------------------------------ Pallas kernel ---------------------------------
def _make_fused_kernel(H, W, scale_dims, q, eps, loss_mode, row_tile):
    """One grid step == one batch element b.  Channels live on a leading axis, so
    no lane-splitting slices are needed.  Per-b partial sums go to a lane-dense
    (1, 128) row: lanes [4s..4s+3] = (epe_sum, masked_sum, blur_sum, bin_sum) for
    pyramid scale s, lane [4*S] = realEPE sum for the finest scale."""
    S = len(scale_dims)
    bf = jnp.bfloat16

    def epe_map_fn(d0, d1):
        if loss_mode == "pretrain":
            return jnp.sqrt(d0 * d0 + d1 * d1)
        return jnp.exp(q * jnp.log(jnp.abs(d0) + jnp.abs(d1) + eps))

    def kernel(*refs):
        t_ref, m_ref = refs[0], refs[1]          # (2, H, W) bf16, (H, W) bf16
        out_refs = refs[2:2 + S]                 # (2, h_s, w_s) f32
        k = 2 + S
        mats = []
        for _ in range(S):
            mats.append(refs[k:k + 6])           # dh, dwT, mh, mwT, gr, gcT (bf16)
            k += 6
        uh_ref, uwT_ref = refs[k], refs[k + 1]   # (H, h0), (w0, W) bf16
        sums_ref = refs[k + 2]                   # (1, 128) f32

        lane = lax.broadcasted_iota(jnp.int32, (1, 128), 1)
        row = jnp.zeros((1, 128), jnp.float32)

        m = m_ref[...]                           # (H, W) bf16 (exact 0/1)

        for s in range(S):
            h, w = scale_dims[s]
            dh, dwT, mh, mwT, gr, gcT = mats[s]

            # ---- mask: separable bilinear downsample, then banded-gaussian blur ----
            mr = jnp.dot(mh[...], m, preferred_element_type=jnp.float32)                # (h, W)
            ms = jnp.dot(mr.astype(bf), mwT[...], preferred_element_type=jnp.float32)   # (h, w)
            binm = (ms > 0.0).astype(jnp.float32)
            bin_sum = jnp.sum(binm)
            bc = jnp.dot(binm.astype(bf), gcT[...], preferred_element_type=jnp.float32)  # (h, w)
            blurred = jnp.dot(gr[...], bc.astype(bf), preferred_element_type=jnp.float32)
            blur_sum = jnp.sum(blurred)

            # ---- target: separable 'area' downsample, per channel (no block-diag) ----
            d = []
            for c in range(2):
                tr = jnp.dot(dh[...], t_ref[c], preferred_element_type=jnp.float32)        # (h, W)
                ts = jnp.dot(tr.astype(bf), dwT[...], preferred_element_type=jnp.float32)  # (h, w)
                d.append(ts - out_refs[s][c])
            emap = epe_map_fn(d[0], d[1])                                                  # (h, w) f32
            epe_sum = jnp.sum(emap)
            masked_sum = jnp.sum(emap * blurred)

            row = (row
                   + jnp.where(lane == 4 * s + 0, epe_sum, 0.0)
                   + jnp.where(lane == 4 * s + 1, masked_sum, 0.0)
                   + jnp.where(lane == 4 * s + 2, blur_sum, 0.0)
                   + jnp.where(lane == 4 * s + 3, bin_sum, 0.0))

        # ---- realEPE fused with the finest scale; H-tiled bilinear upsample ----
        # column upsample once per channel: (h0, w0) @ (w0, W) -> (h0, W)
        oc0 = jnp.dot(out_refs[0][0].astype(bf), uwT_ref[...],
                      preferred_element_type=jnp.float32).astype(bf)
        oc1 = jnp.dot(out_refs[0][1].astype(bf), uwT_ref[...],
                      preferred_element_type=jnp.float32).astype(bf)

        n_chunks = H // row_tile

        def body(i, acc):
            r = pl.multiple_of(i * row_tile, row_tile)
            uh_c = uh_ref[pl.ds(r, row_tile), :]                                  # (th, h0)
            up0 = jnp.dot(uh_c, oc0, preferred_element_type=jnp.float32)          # (th, W)
            up1 = jnp.dot(uh_c, oc1, preferred_element_type=jnp.float32)
            rd0 = t_ref[0, pl.ds(r, row_tile), :].astype(jnp.float32) - up0
            rd1 = t_ref[1, pl.ds(r, row_tile), :].astype(jnp.float32) - up1
            return acc + jnp.sum(epe_map_fn(rd0, rd1))

        real_sum = lax.fori_loop(0, n_chunks, body, jnp.float32(0.0))
        row = row + jnp.where(lane == 4 * S, real_sum, 0.0)

        sums_ref[...] = row

    return kernel


# ------------------------------ MixLoss wrapper --------------------------------
class MixLossPallas:
    def __init__(self, cfg):
        self.loss_mode = cfg.LOSS_MODE
        self.weights = list(cfg.LOSS_WEIGHTS)
        self.loss_q = float(cfg.LOSS_Q)
        self.loss_epsilon = float(cfg.LOSS_EPSILON)
        self.kernel_size = int(cfg.LOSS_KERNEL_SIZE)
        self.sigma = float(cfg.LOSS_SIGMA)
        self.lamda = float(cfg.LOSS_LAMDA)
        self.g1d = gauss_1d(self.kernel_size, self.sigma)
        self.single_buffer_consts = _buffered_single_ok()
        self.vmem_limit = _vmem_limit_bytes()

    def _const_spec(self, shape):
        idx = lambda b, _n=len(shape): (0,) * _n
        if self.single_buffer_consts:
            return pl.BlockSpec(shape, idx, pipeline_mode=pl.Buffered(1))
        return pl.BlockSpec(shape, idx)

    def _fused_call(self, t_in, m_in, outs, mats_flat, scale_dims):
        B, _, H, W = t_in.shape
        S = len(outs)
        kernel = _make_fused_kernel(H, W, scale_dims, self.loss_q, self.loss_epsilon,
                                    self.loss_mode, _row_tile(H))
        perb4 = lambda b: (b, 0, 0, 0)
        perb3 = lambda b: (b, 0, 0)

        in_specs = [pl.BlockSpec((None, 2, H, W), perb4),   # target (bf16)
                    pl.BlockSpec((None, H, W), perb3)]      # mask (bf16)
        for (h, w) in scale_dims:
            in_specs.append(pl.BlockSpec((None, 2, h, w), perb4))   # output flow (f32)
        in_specs += [self._const_spec(tuple(m.shape)) for m in mats_flat]

        return pl.pallas_call(
            kernel,
            out_shape=jax.ShapeDtypeStruct((B, 1, 128), jnp.float32),
            grid=(B,),
            in_specs=in_specs,
            out_specs=pl.BlockSpec((None, 1, 128), perb3),
            compiler_params=pltpu.CompilerParams(
                # v7x: split the batch across the two TensorCores.
                # TODO(synk): if B is 1/odd on v7x, add a second parallel axis for balance.
                dimension_semantics=("parallel",),
                vmem_limit_bytes=self.vmem_limit),
        )(t_in, m_in, *outs, *mats_flat)

    # ------- forward -------
    def __call__(self, outputs, target, mask, sparse=False):
        # TODO(synk): sparse=True path (sparse_max_pool + validity-mask gather) not implemented.
        # TODO(synk): forward only; a custom_vjp / backward kernel is needed for jax.grad.
        assert not sparse
        if not isinstance(outputs, (tuple, list)):
            outputs = [outputs]
        assert len(self.weights) == len(outputs)

        B, _, H, W = target.shape
        bf = jnp.bfloat16
        t_in = target.astype(bf)                       # (B, 2, H, W) bf16 (halves DMA bytes)
        m_in = mask.reshape(B, H, W).astype(bf)        # binary mask -> exact in bf16

        scale_dims, mats_flat, outs = [], [], []
        for out_i in outputs:
            _, _, h, w = out_i.shape
            scale_dims.append((h, w))
            outs.append(out_i.astype(jnp.float32))
            mats_flat += [
                jnp.asarray(area_matrix(h, H), bf),                 # dh   (h, H)  area rows
                jnp.asarray(area_matrix(w, W).T, bf),               # dwT  (W, w)  area cols
                jnp.asarray(bilinear_matrix(h, H), bf),             # mh   (h, H)  bilinear rows
                jnp.asarray(bilinear_matrix(w, W).T, bf),           # mwT  (W, w)  bilinear cols
                jnp.asarray(gauss_band_matrix(h, self.g1d), bf),    # Gr   (h, h)
                jnp.asarray(gauss_band_matrix(w, self.g1d).T, bf),  # GcT  (w, w)
            ]
        h0, w0 = scale_dims[0]
        mats_flat += [jnp.asarray(bilinear_matrix(H, h0), bf),      # uh   (H, h0) upsample rows
                      jnp.asarray(bilinear_matrix(W, w0).T, bf)]    # uwT  (w0, W) upsample cols

        sums = self._fused_call(t_in, m_in, outs, mats_flat, scale_dims)
        s = jnp.sum(sums, axis=(0, 1))                 # reduce per-b partial sums -> (128,)

        loss = jnp.float32(0.0)
        S = len(outputs)
        for i, (h, w) in enumerate(scale_dims):
            epe_sum, masked_sum = s[4 * i + 0], s[4 * i + 1]
            blur_sum, bin_sum = s[4 * i + 2], s[4 * i + 3]
            # multiscaleEPE (mean=False): sum(EPE) + lamda * masked_sum/blur_sum * (h*w)
            safe_den = jnp.where(bin_sum > 0, blur_sum, jnp.float32(1.0))
            mask_epe = masked_sum / safe_den * float(h * w)
            scale_loss = epe_sum + self.lamda * jnp.where(bin_sum > 0, mask_epe, jnp.float32(0.0))
            loss = loss + self.weights[i] * scale_loss

        epe = s[4 * S] / float(B * H * W)              # realEPE = mean over (B, H, W)
        result = {"epe": epe, "loss": lax.stop_gradient(loss)}
        return loss, result


# ------------------------------------ main -------------------------------------
if __name__ == "__main__":
    cfg = Cfg()
    loss_fn = MixLossPallas(cfg)

    key = jax.random.PRNGKey(0)
    k1, k2, k3, k4 = jax.random.split(key, 4)
    B, H, W = 2, 16, 16
    target = jax.random.normal(k1, (B, 2, H, W), dtype=jnp.float32)
    out0 = jax.random.normal(k2, (B, 2, H // 2, W // 2), dtype=jnp.float32)   # finest scale
    out1 = jax.random.normal(k3, (B, 2, H // 4, W // 4), dtype=jnp.float32)   # coarser scale
    mask = (jax.random.uniform(k4, (B, 1, H, W)) > 0.5).astype(jnp.float32)

    run = jax.jit(lambda o, t, m: loss_fn(o, t, m))
    loss, result = run((out0, out1), target, mask)
    jax.block_until_ready((loss, result))

    assert np.isfinite(float(loss)) and np.isfinite(float(result["epe"]))
    print("KERNEL_OK")
</pallas_src>

<mosaic_0001>
module attributes {stable_mosaic.version = 11 : i64} {
  func.func @k(%arg0: i32, %arg1: memref<8x128xf32, #tpu.memory_space<vmem>>, %arg2: memref<1x8x128xf32, #tpu.memory_space<vmem>>, %arg3: memref<1x8x128xf32, #tpu.memory_space<vmem>>) attributes {dimension_semantics = [#tpu.dimension_semantics<parallel>], iteration_bounds = array<i64: 2>, scalar_prefetch = 0 : i64, scratch_operands = 0 : i64, tpu.core_type = #tpu.core_type<tc>, window_params = [{pipeline_mode = #tpu.pipeline_mode<synchronous>, transform_indices = @transform_0, window_bounds = array<i64: 8, 128>}, {transform_indices = @transform_1, window_bounds = array<i64: 1, 8, 128>}, {transform_indices = @transform_2, window_bounds = array<i64: 1, 8, 128>}]} {
    %c0 = arith.constant 0 : index
    %c0_0 = arith.constant 0 : index
    %c0_1 = arith.constant 0 : index
    %0 = vector.load %arg2[%c0, %c0_0, %c0_1] : memref<1x8x128xf32, #tpu.memory_space<vmem>>, vector<1x8x128xf32>
    %1 = vector.shape_cast %0 : vector<1x8x128xf32> to vector<8x128xf32>
    %c0_2 = arith.constant 0 : index
    %c0_3 = arith.constant 0 : index
    %2 = vector.load %arg1[%c0_2, %c0_3] : memref<8x128xf32, #tpu.memory_space<vmem>>, vector<8x128xf32>
    %3 = arith.addf %1, %2 : vector<8x128xf32>
    %c0_4 = arith.constant 0 : index
    %c0_5 = arith.constant 0 : index
    %c0_6 = arith.constant 0 : index
    %4 = vector.load %arg3[%c0_4, %c0_5, %c0_6] : memref<1x8x128xf32, #tpu.memory_space<vmem>>, vector<1x8x128xf32>
    %5 = vector.shape_cast %4 : vector<1x8x128xf32> to vector<8x128xf32>
    %6 = vector.shape_cast %3 : vector<8x128xf32> to vector<1x8x128xf32>
    tpu.vector_store %arg3[%c0_4, %c0_5, %c0_6], %6 {strides = array<i32>} : memref<1x8x128xf32, #tpu.memory_space<vmem>>, vector<1x8x128xf32>,
    return
  }
  func.func @transform_0(%arg0: i32) -> (i32, i32) {
    %c0_i32 = arith.constant 0 : i32
    %c0_i32_0 = arith.constant 0 : i32
    %c0_i32_1 = arith.constant 0 : i32
    return %c0_i32, %c0_i32_0 : i32, i32
  }
  func.func @transform_1(%arg0: i32) -> (i32, i32, i32) {
    %c0_i32 = arith.constant 0 : i32
    %c0_i32_0 = arith.constant 0 : i32
    %c0_i32_1 = arith.constant 0 : i32
    return %arg0, %c0_i32, %c0_i32_0 : i32, i32, i32
  }
  func.func @transform_2(%arg0: i32) -> (i32, i32, i32) {
    %c0_i32 = arith.constant 0 : i32
    %c0_i32_0 = arith.constant 0 : i32
    %c0_i32_1 = arith.constant 0 : i32
    return %arg0, %c0_i32, %c0_i32_0 : i32, i32, i32
  }
}

module attributes {stable_mosaic.version = 11 : i64} {
  func.func @kernel(%arg0: i32, %arg1: memref<1x2x16x16xbf16, #tpu.memory_space<vmem>>, %arg2: memref<1x16x16xbf16, #tpu.memory_space<vmem>>, %arg3: memref<1x2x8x8xf32, #tpu.memory_space<vmem>>, %arg4: memref<1x2x4x4xf32, #tpu.memory_space<vmem>>, %arg5: memref<8x16xbf16, #tpu.memory_space<vmem>>, %arg6: memref<16x8xbf16, #tpu.memory_space<vmem>>, %arg7: memref<8x16xbf16, #tpu.memory_space<vmem>>, %arg8: memref<16x8xbf16, #tpu.memory_space<vmem>>, %arg9: memref<8x8xbf16, #tpu.memory_space<vmem>>, %arg10: memref<8x8xbf16, #tpu.memory_space<vmem>>, %arg11: memref<4x16xbf16, #tpu.memory_space<vmem>>, %arg12: memref<16x4xbf16, #tpu.memory_space<vmem>>, %arg13: memref<4x16xbf16, #tpu.memory_space<vmem>>, %arg14: memref<16x4xbf16, #tpu.memory_space<vmem>>, %arg15: memref<4x4xbf16, #tpu.memory_space<vmem>>, %arg16: memref<4x4xbf16, #tpu.memory_space<vmem>>, %arg17: memref<16x8xbf16, #tpu.memory_space<vmem>>, %arg18: memref<8x16xbf16, #tpu.memory_space<vmem>>, %arg19: memref<1x1x128xf32, #tpu.memory_space<vmem>>) attributes {dimension_semantics = [#tpu.dimension_semantics<parallel>], iteration_bounds = array<i64: 2>, scalar_prefetch = 0 : i64, scratch_operands = 0 : i64, tpu.core_type = #tpu.core_type<tc>, window_params = [{transform_indices = @transform_0, window_bounds = array<i64: 1, 2, 16, 16>}, {transform_indices = @transform_1, window_bounds = array<i64: 1, 16, 16>}, {transform_indices = @transform_2, window_bounds = array<i64: 1, 2, 8, 8>}, {transform_indices = @transform_3, window_bounds = array<i64: 1, 2, 4, 4>}, {pipeline_mode = #tpu.pipeline_mode<synchronous>, transform_indices = @transform_4, window_bounds = array<i64: 8, 16>}, {pipeline_mode = #tpu.pipeline_mode<synchronous>, transform_indices = @transform_5, window_bounds = array<i64: 16, 8>}, {pipeline_mode = #tpu.pipeline_mode<synchronous>, transform_indices = @transform_6, window_bounds = array<i64: 8, 16>}, {pipeline_mode = #tpu.pipeline_mode<synchronous>, transform_indices = @transform_7, window_bounds = array<i64: 16, 8>}, {pipeline_mode = #tpu.pipeline_mode<synchronous>, transform_indices = @transform_8, window_bounds = array<i64: 8, 8>}, {pipeline_mode = #tpu.pipeline_mode<synchronous>, transform_indices = @transform_9, window_bounds = array<i64: 8, 8>}, {pipeline_mode = #tpu.pipeline_mode<synchronous>, transform_indices = @transform_10, window_bounds = array<i64: 4, 16>}, {pipeline_mode = #tpu.pipeline_mode<synchronous>, transform_indices = @transform_11, window_bounds = array<i64: 16, 4>}, {pipeline_mode = #tpu.pipeline_mode<synchronous>, transform_indices = @transform_12, window_bounds = array<i64: 4, 16>}, {pipeline_mode = #tpu.pipeline_mode<synchronous>, transform_indices = @transform_13, window_bounds = array<i64: 16, 4>}, {pipeline_mode = #tpu.pipeline_mode<synchronous>, transform_indices = @transform_14, window_bounds = array<i64: 4, 4>}, {pipeline_mode = #tpu.pipeline_mode<synchronous>, transform_indices = @transform_15, window_bounds = array<i64: 4, 4>}, {pipeline_mode = #tpu.pipeline_mode<synchronous>, transform_indices = @transform_16, window_bounds = array<i64: 16, 8>}, {pipeline_mode = #tpu.pipeline_mode<synchronous>, transform_indices = @transform_17, window_bounds = array<i64: 8, 16>}, {transform_indices = @transform_18, window_bounds = array<i64: 1, 1, 128>}]} {
    %0 = tpu.iota {dimensions = array<i32: 1>} : vector<1x128xi32>
    %cst = arith.constant 0.000000e+00 : f32
    %1 = vector.broadcast %cst : f32 to vector<1x128xf32>
    %c0 = arith.constant 0 : index
    %c0_0 = arith.constant 0 : index
    %c0_1 = arith.constant 0 : index
    %2 = vector.load %arg2[%c0, %c0_0, %c0_1] : memref<1x16x16xbf16, #tpu.memory_space<vmem>>, vector<1x16x16xbf16>
    %3 = vector.shape_cast %2 : vector<1x16x16xbf16> to vector<16x16xbf16>
    %c0_2 = arith.constant 0 : index
    %c0_3 = arith.constant 0 : index
    %4 = vector.load %arg7[%c0_2, %c0_3] : memref<8x16xbf16, #tpu.memory_space<vmem>>, vector<8x16xbf16>
    %cst_4 = arith.constant dense<0.000000e+00> : vector<8x16xf32>
    %5 = tpu.matmul %4, %3, %cst_4 {dimension_numbers = #tpu.dot_dimension_numbers<[1], [0], [0], [1], [0, 0, 1, 1], [], []>} : vector<8x16xbf16>, vector<16x16xbf16>, vector<8x16xf32> -> vector<8x16xf32>
    %6 = arith.truncf %5 : vector<8x16xf32> to vector<8x16xbf16>
    %c0_5 = arith.constant 0 : index
    %c0_6 = arith.constant 0 : index
    %7 = vector.load %arg8[%c0_5, %c0_6] : memref<16x8xbf16, #tpu.memory_space<vmem>>, vector<16x8xbf16>
    %cst_7 = arith.constant dense<0.000000e+00> : vector<8x8xf32>
    %8 = tpu.matmul %6, %7, %cst_7 {dimension_numbers = #tpu.dot_dimension_numbers<[1], [0], [0], [1], [0, 0, 1, 1], [], []>} : vector<8x16xbf16>, vector<16x8xbf16>, vector<8x8xf32> -> vector<8x8xf32>
    %cst_8 = arith.constant 0.000000e+00 : f32
    %9 = vector.broadcast %cst_8 : f32 to vector<8x8xf32>
    %10 = arith.cmpf ogt, %8, %9 : vector<8x8xf32>
    %11 = arith.extui %10 : vector<8x8xi1> to vector<8x8xi32>
    %12 = arith.sitofp %11 : vector<8x8xi32> to vector<8x8xf32>
    %13 = vector.shape_cast %12 : vector<8x8xf32> to vector<1x8x8xf32>
    %cst_9 = arith.constant dense<0.000000e+00> : vector<1xf32>
    %14 = vector.multi_reduction <add>, %13, %cst_9 [1, 2] : vector<1x8x8xf32> to vector<1xf32>
    %15 = vector.shape_cast %14 : vector<1xf32> to vector<1x1x1xf32>
    %16 = vector.extract %15[0, 0, 0] : f32 from vector<1x1x1xf32>
    %17 = arith.truncf %12 : vector<8x8xf32> to vector<8x8xbf16>
    %c0_10 = arith.constant 0 : index
    %c0_11 = arith.constant 0 : index
    %18 = vector.load %arg10[%c0_10, %c0_11] : memref<8x8xbf16, #tpu.memory_space<vmem>>, vector<8x8xbf16>
    %cst_12 = arith.constant dense<0.000000e+00> : vector<8x8xf32>
    %19 = tpu.matmul %17, %18, %cst_12 {dimension_numbers = #tpu.dot_dimension_numbers<[1], [0], [0], [1], [0, 0, 1, 1], [], []>} : vector<8x8xbf16>, vector<8x8xbf16>, vector<8x8xf32> -> vector<8x8xf32>
    %c0_13 = arith.constant 0 : index
    %c0_14 = arith.constant 0 : index
    %20 = vector.load %arg9[%c0_13, %c0_14] : memref<8x8xbf16, #tpu.memory_space<vmem>>, vector<8x8xbf16>
    %21 = arith.truncf %19 : vector<8x8xf32> to vector<8x8xbf16>
    %cst_15 = arith.constant dense<0.000000e+00> : vector<8x8xf32>
    %22 = tpu.matmul %20, %21, %cst_15 {dimension_numbers = #tpu.dot_dimension_numbers<[1], [0], [0], [1], [0, 0, 1, 1], [], []>} : vector<8x8xbf16>, vector<8x8xbf16>, vector<8x8xf32> -> vector<8x8xf32>
    %23 = vector.shape_cast %22 : vector<8x8xf32> to vector<1x8x8xf32>
    %cst_16 = arith.constant dense<0.000000e+00> : vector<1xf32>
    %24 = vector.multi_reduction <add>, %23, %cst_16 [1, 2] : vector<1x8x8xf32> to vector<1xf32>
    %25 = vector.shape_cast %24 : vector<1xf32> to vector<1x1x1xf32>
    %26 = vector.extract %25[0, 0, 0] : f32 from vector<1x1x1xf32>
    %c0_17 = arith.constant 0 : index
    %c0_18 = arith.constant 0 : index
    %27 = vector.load %arg5[%c0_17, %c0_18] : memref<8x16xbf16, #tpu.memory_space<vmem>>, vector<8x16xbf16>
    %c0_19 = arith.constant 0 : index
    %c0_20 = arith.constant 0 : index
    %c0_21 = arith.constant 0 : index
    %c0_22 = arith.constant 0 : index
    %28 = vector.load %arg1[%c0_19, %c0_20, %c0_21, %c0_22] : memref<1x2x16x16xbf16, #tpu.memory_space<vmem>>, vector<1x1x16x16xbf16>
    %29 = vector.shape_cast %28 : vector<1x1x16x16xbf16> to vector<16x16xbf16>
    %cst_23 = arith.constant dense<0.000000e+00> : vector<8x16xf32>
    %30 = tpu.matmul %27, %29, %cst_23 {dimension_numbers = #tpu.dot_dimension_numbers<[1], [0], [0], [1], [0, 0, 1, 1], [], []>} : vector<8x16xbf16>, vector<16x16xbf16>, vector<8x16xf32> -> vector<8x16xf32>
    %31 = arith.truncf %30 : vector<8x16xf32> to vector<8x16xbf16>
    %c0_24 = arith.constant 0 : index
    %c0_25 = arith.constant 0 : index
    %32 = vector.load %arg6[%c0_24, %c0_25] : memref<16x8xbf16, #tpu.memory_space<vmem>>, vector<16x8xbf16>
    %cst_26 = arith.constant dense<0.000000e+00> : vector<8x8xf32>
    %33 = tpu.matmul %31, %32, %cst_26 {dimension_numbers = #tpu.dot_dimension_numbers<[1], [0], [0], [1], [0, 0, 1, 1], [], []>} : vector<8x16xbf16>, vector<16x8xbf16>, vector<8x8xf32> -> vector<8x8xf32>
    %c0_27 = arith.constant 0 : index
    %c0_28 = arith.constant 0 : index
    %c0_29 = arith.constant 0 : index
    %c0_30 = arith.constant 0 : index
    %34 = vector.load %arg3[%c0_27, %c0_28, %c0_29, %c0_30] : memref<1x2x8x8xf32, #tpu.memory_space<vmem>>, vector<1x1x8x8xf32>
    %35 = vector.shape_cast %34 : vector<1x1x8x8xf32> to vector<8x8xf32>
    %36 = arith.subf %33, %35 : vector<8x8xf32>
    %c0_31 = arith.constant 0 : index
    %c0_32 = arith.constant 0 : index
    %37 = vector.load %arg5[%c0_31, %c0_32] : memref<8x16xbf16, #tpu.memory_space<vmem>>, vector<8x16xbf16>
    %c0_33 = arith.constant 0 : index
    %c1 = arith.constant 1 : index
    %c0_34 = arith.constant 0 : index
    %c0_35 = arith.constant 0 : index
    %38 = vector.load %arg1[%c0_33, %c1, %c0_34, %c0_35] : memref<1x2x16x16xbf16, #tpu.memory_space<vmem>>, vector<1x1x16x16xbf16>
    %39 = vector.shape_cast %38 : vector<1x1x16x16xbf16> to vector<16x16xbf16>
    %cst_36 = arith.constant dense<0.000000e+00> : vector<8x16xf32>
    %40 = tpu.matmul %37, %39, %cst_36 {dimension_numbers = #tpu.dot_dimension_numbers<[1], [0], [0], [1], [0, 0, 1, 1], [], []>} : vector<8x16xbf16>, vector<16x16xbf16>, vector<8x16xf32> -> vector<8x16xf32>
    %41 = arith.truncf %40 : vector<8x16xf32> to vector<8x16xbf16>
    %c0_37 = arith.constant 0 : index
    %c0_38 = arith.constant 0 : index
    %42 = vector.load %arg6[%c0_37, %c0_38] : memref<16x8xbf16, #tpu.memory_space<vmem>>, vector<16x8xbf16>
    %cst_39 = arith.constant dense<0.000000e+00> : vector<8x8xf32>
    %43 = tpu.matmul %41, %42, %cst_39 {dimension_numbers = #tpu.dot_dimension_numbers<[1], [0], [0], [1], [0, 0, 1, 1], [], []>} : vector<8x16xbf16>, vector<16x8xbf16>, vector<8x8xf32> -> vector<8x8xf32>
    %c0_40 = arith.constant 0 : index
    %c1_41 = arith.constant 1 : index
    %c0_42 = arith.constant 0 : index
    %c0_43 = arith.constant 0 : index
    %44 = vector.load %arg3[%c0_40, %c1_41, %c0_42, %c0_43] : memref<1x2x8x8xf32, #tpu.memory_space<vmem>>, vector<1x1x8x8xf32>
    %45 = vector.shape_cast %44 : vector<1x1x8x8xf32> to vector<8x8xf32>
    %46 = arith.subf %43, %45 : vector<8x8xf32>
    %47 = math.absf %36 : vector<8x8xf32>
    %48 = math.absf %46 : vector<8x8xf32>
    %49 = arith.addf %47, %48 : vector<8x8xf32>
    %cst_44 = arith.constant 0.00999999977 : f32
    %50 = vector.broadcast %cst_44 : f32 to vector<8x8xf32>
    %51 = arith.addf %49, %50 : vector<8x8xf32>
    %52 = math.log %51 : vector<8x8xf32>
    %cst_45 = arith.constant 4.000000e-01 : f32
    %53 = vector.broadcast %cst_45 : f32 to vector<8x8xf32>
    %54 = arith.mulf %53, %52 : vector<8x8xf32>
    %55 = math.exp %54 : vector<8x8xf32>
    %56 = vector.shape_cast %55 : vector<8x8xf32> to vector<1x8x8xf32>
    %cst_46 = arith.constant dense<0.000000e+00> : vector<1xf32>
    %57 = vector.multi_reduction <add>, %56, %cst_46 [1, 2] : vector<1x8x8xf32> to vector<1xf32>
    %58 = vector.shape_cast %57 : vector<1xf32> to vector<1x1x1xf32>
    %59 = vector.extract %58[0, 0, 0] : f32 from vector<1x1x1xf32>
    %60 = arith.mulf %55, %22 : vector<8x8xf32>
    %61 = vector.shape_cast %60 : vector<8x8xf32> to vector<1x8x8xf32>
    %cst_47 = arith.constant dense<0.000000e+00> : vector<1xf32>
    %62 = vector.multi_reduction <add>, %61, %cst_47 [1, 2] : vector<1x8x8xf32> to vector<1xf32>
    %63 = vector.shape_cast %62 : vector<1xf32> to vector<1x1x1xf32>
    %64 = vector.extract %63[0, 0, 0] : f32 from vector<1x1x1xf32>
    %c0_i32 = arith.constant 0 : i32
    %65 = vector.broadcast %c0_i32 : i32 to vector<1x128xi32>
    %66 = arith.cmpi eq, %0, %65 : vector<1x128xi32>
    %cst_48 = arith.constant 0.000000e+00 : f32
    %67 = vector.broadcast %59 : f32 to vector<1x128xf32>
    %68 = vector.broadcast %cst_48 : f32 to vector<1x128xf32>
    %69 = arith.select %66, %67, %68 : vector<1x128xi1>, vector<1x128xf32>
    %70 = arith.addf %1, %69 : vector<1x128xf32>
    %c1_i32 = arith.constant 1 : i32
    %71 = vector.broadcast %c1_i32 : i32 to vector<1x128xi32>
    %72 = arith.cmpi eq, %0, %71 : vector<1x128xi32>
    %cst_49 = arith.constant 0.000000e+00 : f32
    %73 = vector.broadcast %64 : f32 to vector<1x128xf32>
    %74 = vector.broadcast %cst_49 : f32 to vector<1x128xf32>
    %75 = arith.select %72, %73, %74 : vector<1x128xi1>, vector<1x128xf32>
    %76 = arith.addf %70, %75 : vector<1x128xf32>
    %c2_i32 = arith.constant 2 : i32
    %77 = vector.broadcast %c2_i32 : i32 to vector<1x128xi32>
    %78 = arith.cmpi eq, %0, %77 : vector<1x128xi32>
    %cst_50 = arith.constant 0.000000e+00 : f32
    %79 = vector.broadcast %26 : f32 to vector<1x128xf32>
    %80 = vector.broadcast %cst_50 : f32 to vector<1x128xf32>
    %81 = arith.select %78, %79, %80 : vector<1x128xi1>, vector<1x128xf32>
    %82 = arith.addf %76, %81 : vector<1x128xf32>
    %c3_i32 = arith.constant 3 : i32
    %83 = vector.broadcast %c3_i32 : i32 to vector<1x128xi32>
    %84 = arith.cmpi eq, %0, %83 : vector<1x128xi32>
    %cst_51 = arith.constant 0.000000e+00 : f32
    %85 = vector.broadcast %16 : f32 to vector<1x128xf32>
    %86 = vector.broadcast %cst_51 : f32 to vector<1x128xf32>
    %87 = arith.select %84, %85, %86 : vector<1x128xi1>, vector<1x128xf32>
    %88 = arith.addf %82, %87 : vector<1x128xf32>
    %c0_52 = arith.constant 0 : index
    %c0_53 = arith.constant 0 : index
    %89 = vector.load %arg13[%c0_52, %c0_53] : memref<4x16xbf16, #tpu.memory_space<vmem>>, vector<4x16xbf16>
    %cst_54 = arith.constant dense<0.000000e+00> : vector<4x16xf32>
    %90 = tpu.matmul %89, %3, %cst_54 {dimension_numbers = #tpu.dot_dimension_numbers<[1], [0], [0], [1], [0, 0, 1, 1], [], []>} : vector<4x16xbf16>, vector<16x16xbf16>, vector<4x16xf32> -> vector<4x16xf32>
    %91 = arith.truncf %90 : vector<4x16xf32> to vector<4x16xbf16>
    %c0_55 = arith.constant 0 : index
    %c0_56 = arith.constant 0 : index
    %92 = vector.load %arg14[%c0_55, %c0_56] : memref<16x4xbf16, #tpu.memory_space<vmem>>, vector<16x4xbf16>
    %cst_57 = arith.constant dense<0.000000e+00> : vector<4x4xf32>
    %93 = tpu.matmul %91, %92, %cst_57 {dimension_numbers = #tpu.dot_dimension_numbers<[1], [0], [0], [1], [0, 0, 1, 1], [], []>} : vector<4x16xbf16>, vector<16x4xbf16>, vector<4x4xf32> -> vector<4x4xf32>
    %cst_58 = arith.constant 0.000000e+00 : f32
    %94 = vector.broadcast %cst_58 : f32 to vector<4x4xf32>
    %95 = arith.cmpf ogt, %93, %94 : vector<4x4xf32>
    %96 = arith.extui %95 : vector<4x4xi1> to vector<4x4xi32>
    %97 = arith.sitofp %96 : vector<4x4xi32> to vector<4x4xf32>
    %98 = vector.shape_cast %97 : vector<4x4xf32> to vector<1x4x4xf32>
    %cst_59 = arith.constant dense<0.000000e+00> : vector<1xf32>
    %99 = vector.multi_reduction <add>, %98, %cst_59 [1, 2] : vector<1x4x4xf32> to vector<1xf32>
    %100 = vector.shape_cast %99 : vector<1xf32> to vector<1x1x1xf32>
    %101 = vector.extract %100[0, 0, 0] : f32 from vector<1x1x1xf32>
    %102 = arith.truncf %97 : vector<4x4xf32> to vector<4x4xbf16>
    %c0_60 = arith.constant 0 : index
    %c0_61 = arith.constant 0 : index
    %103 = vector.load %arg16[%c0_60, %c0_61] : memref<4x4xbf16, #tpu.memory_space<vmem>>, vector<4x4xbf16>
    %cst_62 = arith.constant dense<0.000000e+00> : vector<4x4xf32>
    %104 = tpu.matmul %102, %103, %cst_62 {dimension_numbers = #tpu.dot_dimension_numbers<[1], [0], [0], [1], [0, 0, 1, 1], [], []>} : vector<4x4xbf16>, vector<4x4xbf16>, vector<4x4xf32> -> vector<4x4xf32>
    %c0_63 = arith.constant 0 : index
    %c0_64 = arith.constant 0 : index
    %105 = vector.load %arg15[%c0_63, %c0_64] : memref<4x4xbf16, #tpu.memory_space<vmem>>, vector<4x4xbf16>
    %106 = arith.truncf %104 : vector<4x4xf32> to vector<4x4xbf16>
    %cst_65 = arith.constant dense<0.000000e+00> : vector<4x4xf32>
    %107 = tpu.matmul %105, %106, %cst_65 {dimension_numbers = #tpu.dot_dimension_numbers<[1], [0], [0], [1], [0, 0, 1, 1], [], []>} : vector<4x4xbf16>, vector<4x4xbf16>, vector<4x4xf32> -> vector<4x4xf32>
    %108 = vector.shape_cast %107 : vector<4x4xf32> to vector<1x4x4xf32>
    %cst_66 = arith.constant dense<0.000000e+00> : vector<1xf32>
    %109 = vector.multi_reduction <add>, %108, %cst_66 [1, 2] : vector<1x4x4xf32> to vector<1xf32>
    %110 = vector.shape_cast %109 : vector<1xf32> to vector<1x1x1xf32>
    %111 = vector.extract %110[0, 0, 0] : f32 from vector<1x1x1xf32>
    %c0_67 = arith.constant 0 : index
    %c0_68 = arith.constant 0 : index
    %112 = vector.load %arg11[%c0_67, %c0_68] : memref<4x16xbf16, #tpu.memory_space<vmem>>, vector<4x16xbf16>
    %c0_69 = arith.constant 0 : index
    %c0_70 = arith.constant 0 : index
    %c0_71 = arith.constant 0 : index
    %c0_72 = arith.constant 0 : index
    %113 = vector.load %arg1[%c0_69, %c0_70, %c0_71, %c0_72] : memref<1x2x16x16xbf16, #tpu.memory_space<vmem>>, vector<1x1x16x16xbf16>
    %114 = vector.shape_cast %113 : vector<1x1x16x16xbf16> to vector<16x16xbf16>
    %cst_73 = arith.constant dense<0.000000e+00> : vector<4x16xf32>
    %115 = tpu.matmul %112, %114, %cst_73 {dimension_numbers = #tpu.dot_dimension_numbers<[1], [0], [0], [1], [0, 0, 1, 1], [], []>} : vector<4x16xbf16>, vector<16x16xbf16>, vector<4x16xf32> -> vector<4x16xf32>
    %116 = arith.truncf %115 : vector<4x16xf32> to vector<4x16xbf16>
    %c0_74 = arith.constant 0 : index
    %c0_75 = arith.constant 0 : index
    %117 = vector.load %arg12[%c0_74, %c0_75] : memref<16x4xbf16, #tpu.memory_space<vmem>>, vector<16x4xbf16>
    %cst_76 = arith.constant dense<0.000000e+00> : vector<4x4xf32>
    %118 = tpu.matmul %116, %117, %cst_76 {dimension_numbers = #tpu.dot_dimension_numbers<[1], [0], [0], [1], [0, 0, 1, 1], [], []>} : vector<4x16xbf16>, vector<16x4xbf16>, vector<4x4xf32> -> vector<4x4xf32>
    %c0_77 = arith.constant 0 : index
    %c0_78 = arith.constant 0 : index
    %c0_79 = arith.constant 0 : index
    %c0_80 = arith.constant 0 : index
    %119 = vector.load %arg4[%c0_77, %c0_78, %c0_79, %c0_80] : memref<1x2x4x4xf32, #tpu.memory_space<vmem>>, vector<1x1x4x4xf32>
    %120 = vector.shape_cast %119 : vector<1x1x4x4xf32> to vector<4x4xf32>
    %121 = arith.subf %118, %120 : vector<4x4xf32>
    %c0_81 = arith.constant 0 : index
    %c0_82 = arith.constant 0 : index
    %122 = vector.load %arg11[%c0_81, %c0_82] : memref<4x16xbf16, #tpu.memory_space<vmem>>, vector<4x16xbf16>
    %c0_83 = arith.constant 0 : index
    %c1_84 = arith.constant 1 : index
    %c0_85 = arith.constant 0 : index
    %c0_86 = arith.constant 0 : index
    %123 = vector.load %arg1[%c0_83, %c1_84, %c0_85, %c0_86] : memref<1x2x16x16xbf16, #tpu.memory_space<vmem>>, vector<1x1x16x16xbf16>
    %124 = vector.shape_cast %123 : vector<1x1x16x16xbf16> to vector<16x16xbf16>
    %cst_87 = arith.constant dense<0.000000e+00> : vector<4x16xf32>
    %125 = tpu.matmul %122, %124, %cst_87 {dimension_numbers = #tpu.dot_dimension_numbers<[1], [0], [0], [1], [0, 0, 1, 1], [], []>} : vector<4x16xbf16>, vector<16x16xbf16>, vector<4x16xf32> -> vector<4x16xf32>
    %126 = arith.truncf %125 : vector<4x16xf32> to vector<4x16xbf16>
    %c0_88 = arith.constant 0 : index
    %c0_89 = arith.constant 0 : index
    %127 = vector.load %arg12[%c0_88, %c0_89] : memref<16x4xbf16, #tpu.memory_space<vmem>>, vector<16x4xbf16>
    %cst_90 = arith.constant dense<0.000000e+00> : vector<4x4xf32>
    %128 = tpu.matmul %126, %127, %cst_90 {dimension_numbers = #tpu.dot_dimension_numbers<[1], [0], [0], [1], [0, 0, 1, 1], [], []>} : vector<4x16xbf16>, vector<16x4xbf16>, vector<4x4xf32> -> vector<4x4xf32>
    %c0_91 = arith.constant 0 : index
    %c1_92 = arith.constant 1 : index
    %c0_93 = arith.constant 0 : index
    %c0_94 = arith.constant 0 : index
    %129 = vector.load %arg4[%c0_91, %c1_92, %c0_93, %c0_94] : memref<1x2x4x4xf32, #tpu.memory_space<vmem>>, vector<1x1x4x4xf32>
    %130 = vector.shape_cast %129 : vector<1x1x4x4xf32> to vector<4x4xf32>
    %131 = arith.subf %128, %130 : vector<4x4xf32>
    %132 = math.absf %121 : vector<4x4xf32>
    %133 = math.absf %131 : vector<4x4xf32>
    %134 = arith.addf %132, %133 : vector<4x4xf32>
    %cst_95 = arith.constant 0.00999999977 : f32
    %135 = vector.broadcast %cst_95 : f32 to vector<4x4xf32>
    %136 = arith.addf %134, %135 : vector<4x4xf32>
    %137 = math.log %136 : vector<4x4xf32>
    %cst_96 = arith.constant 4.000000e-01 : f32
    %138 = vector.broadcast %cst_96 : f32 to vector<4x4xf32>
    %139 = arith.mulf %138, %137 : vector<4x4xf32>
    %140 = math.exp %139 : vector<4x4xf32>
    %141 = vector.shape_cast %140 : vector<4x4xf32> to vector<1x4x4xf32>
    %cst_97 = arith.constant dense<0.000000e+00> : vector<1xf32>
    %142 = vector.multi_reduction <add>, %141, %cst_97 [1, 2] : vector<1x4x4xf32> to vector<1xf32>
    %143 = vector.shape_cast %142 : vector<1xf32> to vector<1x1x1xf32>
    %144 = vector.extract %143[0, 0, 0] : f32 from vector<1x1x1xf32>
    %145 = arith.mulf %140, %107 : vector<4x4xf32>
    %146 = vector.shape_cast %145 : vector<4x4xf32> to vector<1x4x4xf32>
    %cst_98 = arith.constant dense<0.000000e+00> : vector<1xf32>
    %147 = vector.multi_reduction <add>, %146, %cst_98 [1, 2] : vector<1x4x4xf32> to vector<1xf32>
    %148 = vector.shape_cast %147 : vector<1xf32> to vector<1x1x1xf32>
    %149 = vector.extract %148[0, 0, 0] : f32 from vector<1x1x1xf32>
    %c4_i32 = arith.constant 4 : i32
    %150 = vector.broadcast %c4_i32 : i32 to vector<1x128xi32>
    %151 = arith.cmpi eq, %0, %150 : vector<1x128xi32>
    %cst_99 = arith.constant 0.000000e+00 : f32
    %152 = vector.broadcast %144 : f32 to vector<1x128xf32>
    %153 = vector.broadcast %cst_99 : f32 to vector<1x128xf32>
    %154 = arith.select %151, %152, %153 : vector<1x128xi1>, vector<1x128xf32>
    %155 = arith.addf %88, %154 : vector<1x128xf32>
    %c5_i32 = arith.constant 5 : i32
    %156 = vector.broadcast %c5_i32 : i32 to vector<1x128xi32>
    %157 = arith.cmpi eq, %0, %156 : vector<1x128xi32>
    %cst_100 = arith.constant 0.000000e+00 : f32
    %158 = vector.broadcast %149 : f32 to vector<1x128xf32>
    %159 = vector.broadcast %cst_100 : f32 to vector<1x128xf32>
    %160 = arith.select %157, %158, %159 : vector<1x128xi1>, vector<1x128xf32>
    %161 = arith.addf %155, %160 : vector<1x128xf32>
    %c6_i32 = arith.constant 6 : i32
    %162 = vector.broadcast %c6_i32 : i32 to vector<1x128xi32>
    %163 = arith.cmpi eq, %0, %162 : vector<1x128xi32>
    %cst_101 = arith.constant 0.000000e+00 : f32
    %164 = vector.broadcast %111 : f32 to vector<1x128xf32>
    %165 = vector.broadcast %cst_101 : f32 to vector<1x128xf32>
    %166 = arith.select %163, %164, %165 : vector<1x128xi1>, vector<1x128xf32>
    %167 = arith.addf %161, %166 : vector<1x128xf32>
    %c7_i32 = arith.constant 7 : i32
    %168 = vector.broadcast %c7_i32 : i32 to vector<1x128xi32>
    %169 = arith.cmpi eq, %0, %168 : vector<1x128xi32>
    %cst_102 = arith.constant 0.000000e+00 : f32
    %170 = vector.broadcast %101 : f32 to vector<1x128xf32>
    %171 = vector.broadcast %cst_102 : f32 to vector<1x128xf32>
    %172 = arith.select %169, %170, %171 : vector<1x128xi1>, vector<1x128xf32>
    %173 = arith.addf %167, %172 : vector<1x128xf32>
    %c0_103 = arith.constant 0 : index
    %c0_104 = arith.constant 0 : index
    %c0_105 = arith.constant 0 : index
    %c0_106 = arith.constant 0 : index
    %174 = vector.load %arg3[%c0_103, %c0_104, %c0_105, %c0_106] : memref<1x2x8x8xf32, #tpu.memory_space<vmem>>, vector<1x1x8x8xf32>
    %175 = vector.shape_cast %174 : vector<1x1x8x8xf32> to vector<8x8xf32>
    %176 = arith.truncf %175 : vector<8x8xf32> to vector<8x8xbf16>
    %c0_107 = arith.constant 0 : index
    %c0_108 = arith.constant 0 : index
    %177 = vector.load %arg18[%c0_107, %c0_108] : memref<8x16xbf16, #tpu.memory_space<vmem>>, vector<8x16xbf16>
    %cst_109 = arith.constant dense<0.000000e+00> : vector<8x16xf32>
    %178 = tpu.matmul %176, %177, %cst_109 {dimension_numbers = #tpu.dot_dimension_numbers<[1], [0], [0], [1], [0, 0, 1, 1], [], []>} : vector<8x8xbf16>, vector<8x16xbf16>, vector<8x16xf32> -> vector<8x16xf32>
    %179 = arith.truncf %178 : vector<8x16xf32> to vector<8x16xbf16>
    %c0_110 = arith.constant 0 : index
    %c1_111 = arith.constant 1 : index
    %c0_112 = arith.constant 0 : index
    %c0_113 = arith.constant 0 : index
    %180 = vector.load %arg3[%c0_110, %c1_111, %c0_112, %c0_113] : memref<1x2x8x8xf32, #tpu.memory_space<vmem>>, vector<1x1x8x8xf32>
    %181 = vector.shape_cast %180 : vector<1x1x8x8xf32> to vector<8x8xf32>
    %182 = arith.truncf %181 : vector<8x8xf32> to vector<8x8xbf16>
    %c0_114 = arith.constant 0 : index
    %c0_115 = arith.constant 0 : index
    %183 = vector.load %arg18[%c0_114, %c0_115] : memref<8x16xbf16, #tpu.memory_space<vmem>>, vector<8x16xbf16>
    %cst_116 = arith.constant dense<0.000000e+00> : vector<8x16xf32>
    %184 = tpu.matmul %182, %183, %cst_116 {dimension_numbers = #tpu.dot_dimension_numbers<[1], [0], [0], [1], [0, 0, 1, 1], [], []>} : vector<8x8xbf16>, vector<8x16xbf16>, vector<8x16xf32> -> vector<8x16xf32>
    %185 = arith.truncf %184 : vector<8x16xf32> to vector<8x16xbf16>
    %cst_117 = arith.constant 0.000000e+00 : f32
    %c0_i32_118 = arith.constant 0 : i32
    %c16_i32 = arith.constant 16 : i32
    %186 = arith.muli %c0_i32_118, %c16_i32 : i32
    %187 = tpu.assume_multiple %186, 16 : i32
    %188 = arith.index_cast %187 : i32 to index
    %c0_119 = arith.constant 0 : index
    %189 = vector.load %arg17[%188, %c0_119] : memref<16x8xbf16, #tpu.memory_space<vmem>>, vector<16x8xbf16>
    %cst_120 = arith.constant dense<0.000000e+00> : vector<16x16xf32>
    %190 = tpu.matmul %189, %179, %cst_120 {dimension_numbers = #tpu.dot_dimension_numbers<[1], [0], [0], [1], [0, 0, 1, 1], [], []>} : vector<16x8xbf16>, vector<8x16xbf16>, vector<16x16xf32> -> vector<16x16xf32>
    %cst_121 = arith.constant dense<0.000000e+00> : vector<16x16xf32>
    %191 = tpu.matmul %189, %185, %cst_121 {dimension_numbers = #tpu.dot_dimension_numbers<[1], [0], [0], [1], [0, 0, 1, 1], [], []>} : vector<16x8xbf16>, vector<8x16xbf16>, vector<16x16xf32> -> vector<16x16xf32>
    %c0_122 = arith.constant 0 : index
    %c0_123 = arith.constant 0 : index
    %192 = arith.index_cast %187 : i32 to index
    %c0_124 = arith.constant 0 : index
    %193 = vector.load %arg1[%c0_122, %c0_123, %192, %c0_124] : memref<1x2x16x16xbf16, #tpu.memory_space<vmem>>, vector<1x1x16x16xbf16>
    %194 = vector.shape_cast %193 : vector<1x1x16x16xbf16> to vector<16x16xbf16>
    %195 = arith.extf %194 : vector<16x16xbf16> to vector<16x16xf32>
    %196 = arith.subf %195, %190 : vector<16x16xf32>
    %c0_125 = arith.constant 0 : index
    %c1_126 = arith.constant 1 : index
    %197 = arith.index_cast %187 : i32 to index
    %c0_127 = arith.constant 0 : index
    %198 = vector.load %arg1[%c0_125, %c1_126, %197, %c0_127] : memref<1x2x16x16xbf16, #tpu.memory_space<vmem>>, vector<1x1x16x16xbf16>
    %199 = vector.shape_cast %198 : vector<1x1x16x16xbf16> to vector<16x16xbf16>
    %200 = arith.extf %199 : vector<16x16xbf16> to vector<16x16xf32>
    %201 = arith.subf %200, %191 : vector<16x16xf32>
    %202 = math.absf %196 : vector<16x16xf32>
    %203 = math.absf %201 : vector<16x16xf32>
    %204 = arith.addf %202, %203 : vector<16x16xf32>
    %cst_128 = arith.constant 0.00999999977 : f32
    %205 = vector.broadcast %cst_128 : f32 to vector<16x16xf32>
    %206 = arith.addf %204, %205 : vector<16x16xf32>
    %207 = math.log %206 : vector<16x16xf32>
    %cst_129 = arith.constant 4.000000e-01 : f32
    %208 = vector.broadcast %cst_129 : f32 to vector<16x16xf32>
    %209 = arith.mulf %208, %207 : vector<16x16xf32>
    %210 = math.exp %209 : vector<16x16xf32>
    %211 = vector.shape_cast %210 : vector<16x16xf32> to vector<1x16x16xf32>
    %cst_130 = arith.constant dense<0.000000e+00> : vector<1xf32>
    %212 = vector.multi_reduction <add>, %211, %cst_130 [1, 2] : vector<1x16x16xf32> to vector<1xf32>
    %213 = vector.shape_cast %212 : vector<1xf32> to vector<1x1x1xf32>
    %214 = vector.extract %213[0, 0, 0] : f32 from vector<1x1x1xf32>
    %215 = arith.addf %cst_117, %214 : f32
    %c1_i32_131 = arith.constant 1 : i32
    %c8_i32 = arith.constant 8 : i32
    %216 = vector.broadcast %c8_i32 : i32 to vector<1x128xi32>
    %217 = arith.cmpi eq, %0, %216 : vector<1x128xi32>
    %cst_132 = arith.constant 0.000000e+00 : f32
    %218 = vector.broadcast %215 : f32 to vector<1x128xf32>
    %219 = vector.broadcast %cst_132 : f32 to vector<1x128xf32>
    %220 = arith.select %217, %218, %219 : vector<1x128xi1>, vector<1x128xf32>
    %221 = arith.addf %173, %220 : vector<1x128xf32>
    %c0_133 = arith.constant 0 : index
    %c0_134 = arith.constant 0 : index
    %c0_135 = arith.constant 0 : index
    %222 = vector.load %arg19[%c0_133, %c0_134, %c0_135] : memref<1x1x128xf32, #tpu.memory_space<vmem>>, vector<1x1x128xf32>
    %223 = vector.shape_cast %222 : vector<1x1x128xf32> to vector<1x128xf32>
    %224 = vector.shape_cast %221 : vector<1x128xf32> to vector<1x1x128xf32>
    tpu.vector_store %arg19[%c0_133, %c0_134, %c0_135], %224 {strides = array<i32>} : memref<1x1x128xf32, #tpu.memory_space<vmem>>, vector<1x1x128xf32>,
    return
  }
  func.func @transform_0(%arg0: i32) -> (i32, i32, i32, i32) {
    %c0_i32 = arith.constant 0 : i32
    %c0_i32_0 = arith.constant 0 : i32
    %c0_i32_1 = arith.constant 0 : i32
    %c0_i32_2 = arith.constant 0 : i32
    return %arg0, %c0_i32, %c0_i32_0, %c0_i32_1 : i32, i32, i32, i32
  }
  func.func @transform_1(%arg0: i32) -> (i32, i32, i32) {
    %c0_i32 = arith.constant 0 : i32
    %c0_i32_0 = arith.constant 0 : i32
    %c0_i32_1 = arith.constant 0 : i32
    return %arg0, %c0_i32, %c0_i32_0 : i32, i32, i32
  }
  func.func @transform_2(%arg0: i32) -> (i32, i32, i32, i32) {
    %c0_i32 = arith.constant 0 : i32
    %c0_i32_0 = arith.constant 0 : i32
    %c0_i32_1 = arith.constant 0 : i32
    %c0_i32_2 = arith.constant 0 : i32
    return %arg0, %c0_i32, %c0_i32_0, %c0_i32_1 : i32, i32, i32, i32
  }
  func.func @transform_3(%arg0: i32) -> (i32, i32, i32, i32) {
    %c0_i32 = arith.constant 0 : i32
    %c0_i32_0 = arith.constant 0 : i32
    %c0_i32_1 = arith.constant 0 : i32
    %c0_i32_2 = arith.constant 0 : i32
    return %arg0, %c0_i32, %c0_i32_0, %c0_i32_1 : i32, i32, i32, i32
  }
  func.func @transform_4(%arg0: i32) -> (i32, i32) {
    %c0_i32 = arith.constant 0 : i32
    %c0_i32_0 = arith.constant 0 : i32
    %c0_i32_1 = arith.constant 0 : i32
    return %c0_i32, %c0_i32_0 : i32, i32
  }
  func.func @transform_5(%arg0: i32) -> (i32, i32) {
    %c0_i32 = arith.constant 0 : i32
    %c0_i32_0 = arith.constant 0 : i32
    %c0_i32_1 = arith.constant 0 : i32
    return %c0_i32, %c0_i32_0 : i32, i32
  }
  func.func @transform_6(%arg0: i32) -> (i32, i32) {
    %c0_i32 = arith.constant 0 : i32
    %c0_i32_0 = arith.constant 0 : i32
    %c0_i32_1 = arith.constant 0 : i32
    return %c0_i32, %c0_i32_0 : i32, i32
  }
  func.func @transform_7(%arg0: i32) -> (i32, i32) {
    %c0_i32 = arith.constant 0 : i32
    %c0_i32_0 = arith.constant 0 : i32
    %c0_i32_1 = arith.constant 0 : i32
    return %c0_i32, %c0_i32_0 : i32, i32
  }
  func.func @transform_8(%arg0: i32) -> (i32, i32) {
    %c0_i32 = arith.constant 0 : i32
    %c0_i32_0 = arith.constant 0 : i32
    %c0_i32_1 = arith.constant 0 : i32
    return %c0_i32, %c0_i32_0 : i32, i32
  }
  func.func @transform_9(%arg0: i32) -> (i32, i32) {
    %c0_i32 = arith.constant 0 : i32
    %c0_i32_0 = arith.constant 0 : i32
    %c0_i32_1 = arith.constant 0 : i32
    return %c0_i32, %c0_i32_0 : i32, i32
  }
  func.func @transform_10(%arg0: i32) -> (i32, i32) {
    %c0_i32 = arith.constant 0 : i32
    %c0_i32_0 = arith.constant 0 : i32
    %c0_i32_1 = arith.constant 0 : i32
    return %c0_i32, %c0_i32_0 : i32, i32
  }
  func.func @transform_11(%arg0: i32) -> (i32, i32) {
    %c0_i32 = arith.constant 0 : i32
    %c0_i32_0 = arith.constant 0 : i32
    %c0_i32_1 = arith.constant 0 : i32
    return %c0_i32, %c0_i32_0 : i32, i32
  }
  func.func @transform_12(%arg0: i32) -> (i32, i32) {
    %c0_i32 = arith.constant 0 : i32
    %c0_i32_0 = arith.constant 0 : i32
    %c0_i32_1 = arith.constant 0 : i32
    return %c0_i32, %c0_i32_0 : i32, i32
  }
  func.func @transform_13(%arg0: i32) -> (i32, i32) {
    %c0_i32 = arith.constant 0 : i32
    %c0_i32_0 = arith.constant 0 : i32
    %c0_i32_1 = arith.constant 0 : i32
    return %c0_i32, %c0_i32_0 : i32, i32
  }
  func.func @transform_14(%arg0: i32) -> (i32, i32) {
    %c0_i32 = arith.constant 0 : i32
    %c0_i32_0 = arith.constant 0 : i32
    %c0_i32_1 = arith.constant 0 : i32
    return %c0_i32, %c0_i32_0 : i32, i32
  }
  func.func @transform_15(%arg0: i32) -> (i32, i32) {
    %c0_i32 = arith.constant 0 : i32
    %c0_i32_0 = arith.constant 0 : i32
    %c0_i32_1 = arith.constant 0 : i32
    return %c0_i32, %c0_i32_0 : i32, i32
  }
  func.func @transform_16(%arg0: i32) -> (i32, i32) {
    %c0_i32 = arith.constant 0 : i32
    %c0_i32_0 = arith.constant 0 : i32
    %c0_i32_1 = arith.constant 0 : i32
    return %c0_i32, %c0_i32_0 : i32, i32
  }
  func.func @transform_17(%arg0: i32) -> (i32, i32) {
    %c0_i32 = arith.constant 0 : i32
    %c0_i32_0 = arith.constant 0 : i32
    %c0_i32_1 = arith.constant 0 : i32
    return %c0_i32, %c0_i32_0 : i32, i32
  }
  func.func @transform_18(%arg0: i32) -> (i32, i32, i32) {
    %c0_i32 = arith.constant 0 : i32
    %c0_i32_0 = arith.constant 0 : i32
    %c0_i32_1 = arith.constant 0 : i32
    return %arg0, %c0_i32, %c0_i32_0 : i32, i32, i32
  }
}

</mosaic_0001>

<llo_original>
// kernel: tpu_custom_call.1
$region0: #{tpu_custom_call.1}
  #allocation0 [shape = 'u32[]', space=smem, size = 0x4, offset = 0x4, fixed_abs, tag = 'smem constant byte address 0x4 - core index']
  #allocation1 [shape = 'u32[72,128]{1,0:T(1,128)}', space=vmem, size = 0x9000, scoped, tag = 'internal scratch']
  %s0 = inlined_call_operand.hbm [shape: f32[8,128], index: 0, kind: input, shape index: {}]
  %s1 = inlined_call_operand.hbm [shape: f32[2,8,128], index: 1, kind: input, shape index: {}]
  %s2 = inlined_call_operand.hbm [shape: f32[2,8,128], index: 2, kind: output, shape index: {}]
  %s3 = sld [smem:[#allocation0]]
  $region49: #{tpu_custom_call.1} parent=0
    _
  %s5 = ssub.s32 1, %s3
  %s6 = scalar_select 0, %s5, %s3
  $region1: #{tpu_custom_call.1} parent=0
    #allocation2 [shape = 'u8[4096]{0}', space=vmem, size = 0x1000, scoped, tag = 'input window, operand 0, single buffered']
    #allocation3 [shape = 's32[2]{0}', space=sflag, size = 0x8, scoped, tag = 'scoped memory for tpu_custom_call.1']
    #allocation4 [shape = 's32[2]{0}', space=sflag, size = 0x8, scoped, tag = 'scoped memory for tpu_custom_call.1']
    #allocation5 [shape = 'u8[8192]{0}', space=vmem, size = 0x2000, scoped, tag = 'input window, operand 1']
    #allocation6 [shape = 's32[2]{0}', space=sflag, size = 0x8, scoped, tag = 'scoped memory for tpu_custom_call.1']
    #allocation7 [shape = 'u8[8192]{0}', space=vmem, size = 0x2000, scoped, tag = 'output window, operand 0']
    %7 = vsyncpa [#allocation3], 0
    %8 = vsyncpa [#allocation6], 0
    %s9 = scalar_lea.sflag [#allocation6], 1
    %10 = vsyncpa %s9, 0
    %11 = vsyncpa [#allocation4], 0
    %s12 = scalar_lea.sflag [#allocation4], 1
    %13 = vsyncpa %s12, 0
    loop: start=0, step=1, limit=4
    $region2: #{tpu_custom_call.1} parent=1 // loop_pre_header
      _
    $region3: #{tpu_custom_call.1} parent=1 // loop_header
      %s15 = sphi 0, %s19
      %p16 = scmp.ge.s32.totalorder %s15, 4
      %s23 = sphi 0, %s23
      %s25 = sphi 0, %s23
      %s26 = sphi 0, %s25
      %s40 = sphi 0, %s26
      %s46 = sphi 0, %s48
      %s49 = sphi 0, %s46
      %s50 = sphi 0, %s49
      %s66 = sphi 0, %s50
      %s72 = sphi 0, %s74
      %s75 = sphi 0, %s72
      %s76 = sphi 0, %s75
      %s92 = sphi 0, %s76
    $region4: #{tpu_custom_call.1} parent=1 // loop_header_branch
      %18 = sbr.rel (%p16) target = $region8
    $region5: #{tpu_custom_call.1} parent=1 // loop_body
      %s20 = ssub.s32 %s15, 1
      %s21 = ssub.s32 %s15, 2
      %s22 = sadd.s32 %s15, 1
      %s24 = sadd.s32 %s23, 1
      %p27 = scmp.eq.s32.totalorder %s15, 1
      %p28 = scmp.ne.s32.totalorder %s23, %s25
      %p29 = scmp.eq.s32.totalorder %s15, 0
      %p30 = por %p28, %p29
      %p31 = scmp.ne.s32.totalorder %s23, %s25
      %p32 = scmp.eq.s32.totalorder %s20, 1
      %p33 = por %p31, %p32
      %p34 = scmp.ne.s32.totalorder %s25, %s26
      %p35 = scmp.eq.s32.totalorder %s20, 0
      %p36 = por %p34, %p35
      %p37 = scmp.ne.s32.totalorder %s25, %s26
      %p38 = scmp.eq.s32.totalorder %s21, 1
      %p39 = por %p37, %p38
      %p41 = scmp.ne.s32.totalorder %s26, %s40
      %p42 = scmp.eq.s32.totalorder %s21, 0
      %p43 = por %p41, %p42
      %s44 = ssub.s32 %s15, %s22
      %p45 = scmp.eq.s32.totalorder %s44, 0
      %s47 = sadd.s32 %s46, 1
      %s48 = scalar_select %p45, %s46, %s47
      %p51 = pneg %p45
      %p52 = scmp.eq.s32.totalorder %s15, 1
      %p53 = por %p51, %p52
      %p54 = scmp.ne.s32.totalorder %s46, %s49
      %p55 = scmp.eq.s32.totalorder %s15, 0
      %p56 = por %p54, %p55
      %p57 = scmp.ne.s32.totalorder %s46, %s49
      %p58 = scmp.eq.s32.totalorder %s20, 1
      %p59 = por %p57, %p58
      %p60 = scmp.ne.s32.totalorder %s49, %s50
      %p61 = scmp.eq.s32.totalorder %s20, 0
      %p62 = por %p60, %p61
      %p63 = scmp.ne.s32.totalorder %s49, %s50
      %p64 = scmp.eq.s32.totalorder %s21, 1
      %p65 = por %p63, %p64
      %p67 = scmp.ne.s32.totalorder %s50, %s66
      %p68 = scmp.eq.s32.totalorder %s21, 0
      %p69 = por %p67, %p68
      %s70 = ssub.s32 %s15, %s22
      %p71 = scmp.eq.s32.totalorder %s70, 0
      %s73 = sadd.s32 %s72, 1
      %s74 = scalar_select %p71, %s72, %s73
      %p77 = pneg %p71
      %p78 = scmp.eq.s32.totalorder %s15, 1
      %p79 = por %p77, %p78
      %p80 = scmp.ne.s32.totalorder %s72, %s75
      %p81 = scmp.eq.s32.totalorder %s15, 0
      %p82 = por %p80, %p81
      %p83 = scmp.ne.s32.totalorder %s72, %s75
      %p84 = scmp.eq.s32.totalorder %s20, 1
      %p85 = por %p83, %p84
      %p86 = scmp.ne.s32.totalorder %s75, %s76
      %p87 = scmp.eq.s32.totalorder %s20, 0
      %p88 = por %p86, %p87
      %p89 = scmp.ne.s32.totalorder %s75, %s76
      %p90 = scmp.eq.s32.totalorder %s21, 1
      %p91 = por %p89, %p90
      %p93 = scmp.ne.s32.totalorder %s76, %s92
      %p94 = scmp.eq.s32.totalorder %s21, 0
      %p95 = por %p93, %p94
      %p96 = scmp.le.s32.totalorder 1, %s15
      %p97 = scmp.lt.s32.totalorder %s15, 3
      %p98 = pnand %p96, %p97
      %p99 = pneg %p98
      // Predicated region
      $region9: #{tpu_custom_call.1} parent=5 // pred_check
        _
      $region10: #{tpu_custom_call.1} parent=5 // pred_check_branch
        %101 = sbr.rel (%p98) target = $region12
      $region11: #{tpu_custom_call.1} parent=5 // pred_region
        %s102 = ssub.s32 %s15, 1
        // Predicated region
        $region13: #{tpu_custom_call.1} parent=11 // pred_check
          %p103 = pneg %p36
        $region14: #{tpu_custom_call.1} parent=11 // pred_check_branch
          %105 = sbr.rel (%p103) target = $region16
        $region15: #{tpu_custom_call.1} parent=11 // pred_region
          %107 = vsyncadd [#allocation3], 0
          %s109 = sshll.u32 %s0, 4
          %s110 = int_to_ptr.hbm [resolvable:$true] %s109
          %s111 = sshll.u32 [#allocation2], 4
          %s112 = int_to_ptr.vmem [resolvable:$true] %s111
          %114 = dma.hbm_to_vmem [thread:$0]  %s110, 128, %s112, [#allocation3]
        $region16: #{tpu_custom_call.1} parent=11 // pred_fallthru
          _
      $region12: #{tpu_custom_call.1} parent=5 // pred_fallthru
        _
      %p115 = scmp.lt.s32.totalorder %s15, 2
      // Predicated region
      $region17: #{tpu_custom_call.1} parent=5 // pred_check
        %p116 = pneg %p115
      $region18: #{tpu_custom_call.1} parent=5 // pred_check_branch
        %118 = sbr.rel (%p116) target = $region20
      $region19: #{tpu_custom_call.1} parent=5 // pred_region
        // Predicated region
        $region21: #{tpu_custom_call.1} parent=19 // pred_check
          %p119 = pneg %p56
        $region22: #{tpu_custom_call.1} parent=19 // pred_check_branch
          %121 = sbr.rel (%p119) target = $region24
        $region23: #{tpu_custom_call.1} parent=19 // pred_region
          %s122 = sand.u32 %s46, 1
          %s123 = scalar_lea.sflag [#allocation6], %s122
          %s124 = sand.u32 %s46, 1
          %s125 = smul.addr %s124, 8
          %s126 = scalar_lea.vmem [#allocation5], %s125
          %128 = vsyncadd %s123, 0
          %s129 = smul.addr %s15, 8
          %s130 = scalar_lea.hbm %s1, %s129
          %s132 = sshll.u32 %s130, 4
          %s133 = int_to_ptr.hbm [resolvable:$true] %s132
          %s134 = sshll.u32 %s126, 4
          %s135 = int_to_ptr.vmem [resolvable:$true] %s134
          %137 = dma.hbm_to_vmem [thread:$0]  %s133, 128, %s135, %s123
        $region24: #{tpu_custom_call.1} parent=19 // pred_fallthru
          _
      $region20: #{tpu_custom_call.1} parent=5 // pred_fallthru
        _
      %p138 = scmp.le.s32.totalorder 1, %s15
      %p139 = scmp.lt.s32.totalorder %s15, 3
      %p140 = pnand %p138, %p139
      %p141 = pneg %p140
      // Predicated region
      $region25: #{tpu_custom_call.1} parent=5 // pred_check
        _
      $region26: #{tpu_custom_call.1} parent=5 // pred_check_branch
        %143 = sbr.rel (%p140) target = $region28
      $region27: #{tpu_custom_call.1} parent=5 // pred_region
        %s144 = ssub.s32 %s15, 1
        // Predicated region
        $region29: #{tpu_custom_call.1} parent=27 // pred_check
          %p145 = pneg %p36
        $region30: #{tpu_custom_call.1} parent=27 // pred_check_branch
          %147 = sbr.rel (%p145) target = $region32
        $region31: #{tpu_custom_call.1} parent=27 // pred_region
          %149 = dma.done [#allocation3], 128
        $region32: #{tpu_custom_call.1} parent=27 // pred_fallthru
          _
        %s150 = sand.u32 %s49, 1
        %s151 = scalar_lea.sflag [#allocation6], %s150
        %s152 = sand.u32 %s49, 1
        %s153 = smul.addr %s152, 8
        %s154 = scalar_lea.vmem [#allocation5], %s153
        // Predicated region
        $region33: #{tpu_custom_call.1} parent=27 // pred_check
          %p155 = pneg %p62
        $region34: #{tpu_custom_call.1} parent=27 // pred_check_branch
          %157 = sbr.rel (%p155) target = $region36
        $region35: #{tpu_custom_call.1} parent=27 // pred_region
          %159 = dma.done %s151, 128
        $region36: #{tpu_custom_call.1} parent=27 // pred_fallthru
          _
        %p160 = pneg %p36
        %p161 = pneg %p33
        %s162 = sand.u32 %s49, 1
        %s163 = scalar_lea.sflag [#allocation6], %s162
        %s164 = sand.u32 %s49, 1
        %s165 = smul.addr %s164, 8
        %s166 = scalar_lea.vmem [#allocation5], %s165
        %p167 = pneg %p62
        %p168 = pneg %p59
        %p169 = pneg %p88
        %p170 = pneg %p85
        %s171 = sand.u32 %s75, 1
        %s172 = scalar_lea.sflag [#allocation4], %s171
        %s173 = sand.u32 %s75, 1
        %s174 = smul.addr %s173, 8
        %s175 = scalar_lea.vmem [#allocation7], %s174
        %v176 = vld [vmem:[%s154] sm:$0xff]
        %v177 = vld [vmem:[#allocation2] sm:$0xff]
        %v178 = vadd.f32 %v176, %v177
        %179 = vst [vmem:[%s175] sm:$0xff] %v178
        %s180 = sand.u32 %s75, 1
        %s181 = scalar_lea.sflag [#allocation4], %s180
        %s182 = sand.u32 %s75, 1
        %s183 = smul.addr %s182, 8
        %s184 = scalar_lea.vmem [#allocation7], %s183
        // Predicated region
        $region37: #{tpu_custom_call.1} parent=27 // pred_check
          %p185 = pneg %p85
        $region38: #{tpu_custom_call.1} parent=27 // pred_check_branch
          %187 = sbr.rel (%p185) target = $region40
        $region39: #{tpu_custom_call.1} parent=27 // pred_region
          %189 = vsyncadd %s181, 0
          %s190 = smul.addr %s20, 8
          %s191 = scalar_lea.hbm %s2, %s190
          %s193 = sshll.u32 %s184, 4
          %s194 = int_to_ptr.vmem [resolvable:$true] %s193
          %s195 = sshll.u32 %s191, 4
          %s196 = int_to_ptr.hbm [resolvable:$true] %s195
          %198 = dma.vmem_to_hbm [thread:$0]  %s194, 128, %s196, %s181
        $region40: #{tpu_custom_call.1} parent=27 // pred_fallthru
          _
      $region28: #{tpu_custom_call.1} parent=5 // pred_fallthru
        _
      %p199 = scmp.le.s32.totalorder 2, %s15
      // Predicated region
      $region41: #{tpu_custom_call.1} parent=5 // pred_check
        %p200 = pneg %p199
      $region42: #{tpu_custom_call.1} parent=5 // pred_check_branch
        %202 = sbr.rel (%p200) target = $region44
      $region43: #{tpu_custom_call.1} parent=5 // pred_region
        %s203 = ssub.s32 %s15, 2
        // Predicated region
        $region45: #{tpu_custom_call.1} parent=43 // pred_check
          %p204 = pneg %p91
        $region46: #{tpu_custom_call.1} parent=43 // pred_check_branch
          %206 = sbr.rel (%p204) target = $region48
        $region47: #{tpu_custom_call.1} parent=43 // pred_region
          %s207 = sand.u32 %s76, 1
          %s208 = scalar_lea.sflag [#allocation4], %s207
          %s209 = sand.u32 %s76, 1
          %s210 = smul.addr %s209, 8
          %s211 = scalar_lea.vmem [#allocation7], %s210
          %213 = dma.done %s208, 128
        $region48: #{tpu_custom_call.1} parent=43 // pred_fallthru
          _
      $region44: #{tpu_custom_call.1} parent=5 // pred_fallthru
        _
    $region6: #{tpu_custom_call.1} parent=1 // loop_footer
      %s19 = sadd.s32 1, %s15
    $region7: #{tpu_custom_call.1} parent=1 // loop_footer_branch
      %14 = sbr.rel target = $region3
    $region8: #{tpu_custom_call.1} parent=1 // loop_exit
      _
    %214 = vsyncpa [#allocation3], 1
    %s215 = scalar_lea.sflag [#allocation3], 1
    %216 = vsyncpa %s215, 1
    %217 = vsyncpa [#allocation6], 1
    %s218 = scalar_lea.sflag [#allocation6], 1
    %219 = vsyncpa %s218, 1
    %220 = vsyncpa [#allocation4], 1
    %s221 = scalar_lea.sflag [#allocation4], 1
    %222 = vsyncpa %s221, 1

// kernel: _lambda_.1
$region0: #{_lambda_.1}
  #allocation0 [shape = 'u32[]', space=smem, size = 0x4, offset = 0x4, fixed_abs, tag = 'smem constant byte address 0x4 - core index']
  #allocation1 [shape = 'u32[72,128]{1,0:T(1,128)}', space=vmem, size = 0x9000, scoped, tag = 'internal scratch']
  %s0 = inlined_call_operand.vmem [shape: bf16[2,2,16,16], index: 0, kind: input, shape index: {}]
  %s1 = inlined_call_operand.vmem [shape: bf16[2,16,16], index: 1, kind: input, shape index: {}]
  %s2 = inlined_call_operand.vmem [shape: f32[2,2,8,8], index: 2, kind: input, shape index: {}]
  %s3 = inlined_call_operand.vmem [shape: f32[2,2,4,4], index: 3, kind: input, shape index: {}]
  %s4 = inlined_call_operand.vmem [shape: bf16[8,16], index: 4, kind: input, shape index: {}, may-alias: {4,6}]
  %s5 = inlined_call_operand.vmem [shape: bf16[16,8], index: 5, kind: input, shape index: {}, may-alias: {5,7}]
  %s6 = inlined_call_operand.vmem [shape: bf16[8,16], index: 6, kind: input, shape index: {}, may-alias: {4,6}]
  %s7 = inlined_call_operand.vmem [shape: bf16[16,8], index: 7, kind: input, shape index: {}, may-alias: {5,7}]
  %s8 = inlined_call_operand.vmem [shape: bf16[8,8], index: 8, kind: input, shape index: {}, may-alias: {8,9}]
  %s9 = inlined_call_operand.vmem [shape: bf16[8,8], index: 9, kind: input, shape index: {}, may-alias: {8,9}]
  %s10 = inlined_call_operand.vmem [shape: bf16[4,16], index: 10, kind: input, shape index: {}]
  %s11 = inlined_call_operand.vmem [shape: bf16[16,4], index: 11, kind: input, shape index: {}]
  %s12 = inlined_call_operand.vmem [shape: bf16[4,16], index: 12, kind: input, shape index: {}]
  %s13 = inlined_call_operand.vmem [shape: bf16[16,4], index: 13, kind: input, shape index: {}]
  %s14 = inlined_call_operand.vmem [shape: bf16[4,4], index: 14, kind: input, shape index: {}, may-alias: {14,15}]
  %s15 = inlined_call_operand.vmem [shape: bf16[4,4], index: 15, kind: input, shape index: {}, may-alias: {14,15}]
  %s16 = inlined_call_operand.vmem [shape: bf16[16,8], index: 16, kind: input, shape index: {}]
  %s17 = inlined_call_operand.vmem [shape: bf16[8,16], index: 17, kind: input, shape index: {}]
  %s18 = inlined_call_operand.vmem [shape: f32[2,1,128], index: 18, kind: output, shape index: {}]
  %s19 = sld [smem:[#allocation0]]
  $region105: #{_lambda_.1} parent=0
    _
  %s21 = ssub.s32 1, %s19
  %s22 = scalar_select 0, %s21, %s19
  loop: start=0, step=1, limit=4
  $region2: #{_lambda_.1} parent=0 // loop_pre_header
    _
  $region3: #{_lambda_.1} parent=0 // loop_header
    %s24 = sphi 0, %s28
    %p25 = scmp.ge.s32.totalorder %s24, 4
    %s34 = sphi 0, %s36
    %s37 = sphi 0, %s34
    %s38 = sphi 0, %s37
    %s54 = sphi 0, %s38
    %s60 = sphi 0, %s62
    %s63 = sphi 0, %s60
    %s64 = sphi 0, %s63
    %s80 = sphi 0, %s64
    %s86 = sphi 0, %s88
    %s89 = sphi 0, %s86
    %s90 = sphi 0, %s89
    %s106 = sphi 0, %s90
    %s112 = sphi 0, %s114
    %s115 = sphi 0, %s112
    %s116 = sphi 0, %s115
    %s132 = sphi 0, %s116
    %s136 = sphi 0, %s136
    %s138 = sphi 0, %s136
    %s139 = sphi 0, %s138
    %s153 = sphi 0, %s139
    %s157 = sphi 0, %s157
    %s159 = sphi 0, %s157
    %s160 = sphi 0, %s159
    %s174 = sphi 0, %s160
    %s178 = sphi 0, %s178
    %s180 = sphi 0, %s178
    %s181 = sphi 0, %s180
    %s195 = sphi 0, %s181
    %s199 = sphi 0, %s199
    %s201 = sphi 0, %s199
    %s202 = sphi 0, %s201
    %s216 = sphi 0, %s202
    %s220 = sphi 0, %s220
    %s222 = sphi 0, %s220
    %s223 = sphi 0, %s222
    %s237 = sphi 0, %s223
    %s241 = sphi 0, %s241
    %s243 = sphi 0, %s241
    %s244 = sphi 0, %s243
    %s258 = sphi 0, %s244
    %s262 = sphi 0, %s262
    %s264 = sphi 0, %s262
    %s265 = sphi 0, %s264
    %s279 = sphi 0, %s265
    %s283 = sphi 0, %s283
    %s285 = sphi 0, %s283
    %s286 = sphi 0, %s285
    %s300 = sphi 0, %s286
    %s304 = sphi 0, %s304
    %s306 = sphi 0, %s304
    %s307 = sphi 0, %s306
    %s321 = sphi 0, %s307
    %s325 = sphi 0, %s325
    %s327 = sphi 0, %s325
    %s328 = sphi 0, %s327
    %s342 = sphi 0, %s328
    %s346 = sphi 0, %s346
    %s348 = sphi 0, %s346
    %s349 = sphi 0, %s348
    %s363 = sphi 0, %s349
    %s367 = sphi 0, %s367
    %s369 = sphi 0, %s367
    %s370 = sphi 0, %s369
    %s384 = sphi 0, %s370
    %s388 = sphi 0, %s388
    %s390 = sphi 0, %s388
    %s391 = sphi 0, %s390
    %s405 = sphi 0, %s391
    %s409 = sphi 0, %s409
    %s411 = sphi 0, %s409
    %s412 = sphi 0, %s411
    %s426 = sphi 0, %s412
    %s432 = sphi 0, %s434
    %s435 = sphi 0, %s432
    %s436 = sphi 0, %s435
    %s452 = sphi 0, %s436
  $region4: #{_lambda_.1} parent=0 // loop_header_branch
    %27 = sbr.rel (%p25) target = $region8
  $region5: #{_lambda_.1} parent=0 // loop_body
    %s29 = ssub.s32 %s24, 1
    %s30 = ssub.s32 %s24, 2
    %s31 = sadd.s32 %s24, 1
    %s32 = ssub.s32 %s24, %s31
    %p33 = scmp.eq.s32.totalorder %s32, 0
    %s35 = sadd.s32 %s34, 1
    %s36 = scalar_select %p33, %s34, %s35
    %p39 = pneg %p33
    %p40 = scmp.eq.s32.totalorder %s24, 1
    %p41 = por %p39, %p40
    %p42 = scmp.ne.s32.totalorder %s34, %s37
    %p43 = scmp.eq.s32.totalorder %s24, 0
    %p44 = por %p42, %p43
    %p45 = scmp.ne.s32.totalorder %s34, %s37
    %p46 = scmp.eq.s32.totalorder %s29, 1
    %p47 = por %p45, %p46
    %p48 = scmp.ne.s32.totalorder %s37, %s38
    %p49 = scmp.eq.s32.totalorder %s29, 0
    %p50 = por %p48, %p49
    %p51 = scmp.ne.s32.totalorder %s37, %s38
    %p52 = scmp.eq.s32.totalorder %s30, 1
    %p53 = por %p51, %p52
    %p55 = scmp.ne.s32.totalorder %s38, %s54
    %p56 = scmp.eq.s32.totalorder %s30, 0
    %p57 = por %p55, %p56
    %s58 = ssub.s32 %s24, %s31
    %p59 = scmp.eq.s32.totalorder %s58, 0
    %s61 = sadd.s32 %s60, 1
    %s62 = scalar_select %p59, %s60, %s61
    %p65 = pneg %p59
    %p66 = scmp.eq.s32.totalorder %s24, 1
    %p67 = por %p65, %p66
    %p68 = scmp.ne.s32.totalorder %s60, %s63
    %p69 = scmp.eq.s32.totalorder %s24, 0
    %p70 = por %p68, %p69
    %p71 = scmp.ne.s32.totalorder %s60, %s63
    %p72 = scmp.eq.s32.totalorder %s29, 1
    %p73 = por %p71, %p72
    %p74 = scmp.ne.s32.totalorder %s63, %s64
    %p75 = scmp.eq.s32.totalorder %s29, 0
    %p76 = por %p74, %p75
    %p77 = scmp.ne.s32.totalorder %s63, %s64
    %p78 = scmp.eq.s32.totalorder %s30, 1
    %p79 = por %p77, %p78
    %p81 = scmp.ne.s32.totalorder %s64, %s80
    %p82 = scmp.eq.s32.totalorder %s30, 0
    %p83 = por %p81, %p82
    %s84 = ssub.s32 %s24, %s31
    %p85 = scmp.eq.s32.totalorder %s84, 0
    %s87 = sadd.s32 %s86, 1
    %s88 = scalar_select %p85, %s86, %s87
    %p91 = pneg %p85
    %p92 = scmp.eq.s32.totalorder %s24, 1
    %p93 = por %p91, %p92
    %p94 = scmp.ne.s32.totalorder %s86, %s89
    %p95 = scmp.eq.s32.totalorder %s24, 0
    %p96 = por %p94, %p95
    %p97 = scmp.ne.s32.totalorder %s86, %s89
    %p98 = scmp.eq.s32.totalorder %s29, 1
    %p99 = por %p97, %p98
    %p100 = scmp.ne.s32.totalorder %s89, %s90
    %p101 = scmp.eq.s32.totalorder %s29, 0
    %p102 = por %p100, %p101
    %p103 = scmp.ne.s32.totalorder %s89, %s90
    %p104 = scmp.eq.s32.totalorder %s30, 1
    %p105 = por %p103, %p104
    %p107 = scmp.ne.s32.totalorder %s90, %s106
    %p108 = scmp.eq.s32.totalorder %s30, 0
    %p109 = por %p107, %p108
    %s110 = ssub.s32 %s24, %s31
    %p111 = scmp.eq.s32.totalorder %s110, 0
    %s113 = sadd.s32 %s112, 1
    %s114 = scalar_select %p111, %s112, %s113
    %p117 = pneg %p111
    %p118 = scmp.eq.s32.totalorder %s24, 1
    %p119 = por %p117, %p118
    %p120 = scmp.ne.s32.totalorder %s112, %s115
    %p121 = scmp.eq.s32.totalorder %s24, 0
    %p122 = por %p120, %p121
    %p123 = scmp.ne.s32.totalorder %s112, %s115
    %p124 = scmp.eq.s32.totalorder %s29, 1
    %p125 = por %p123, %p124
    %p126 = scmp.ne.s32.totalorder %s115, %s116
    %p127 = scmp.eq.s32.totalorder %s29, 0
    %p128 = por %p126, %p127
    %p129 = scmp.ne.s32.totalorder %s115, %s116
    %p130 = scmp.eq.s32.totalorder %s30, 1
    %p131 = por %p129, %p130
    %p133 = scmp.ne.s32.totalorder %s116, %s132
    %p134 = scmp.eq.s32.totalorder %s30, 0
    %p135 = por %p133, %p134
    %s137 = sadd.s32 %s136, 1
    %p140 = scmp.eq.s32.totalorder %s24, 1
    %p141 = scmp.ne.s32.totalorder %s136, %s138
    %p142 = scmp.eq.s32.totalorder %s24, 0
    %p143 = por %p141, %p142
    %p144 = scmp.ne.s32.totalorder %s136, %s138
    %p145 = scmp.eq.s32.totalorder %s29, 1
    %p146 = por %p144, %p145
    %p147 = scmp.ne.s32.totalorder %s138, %s139
    %p148 = scmp.eq.s32.totalorder %s29, 0
    %p149 = por %p147, %p148
    %p150 = scmp.ne.s32.totalorder %s138, %s139
    %p151 = scmp.eq.s32.totalorder %s30, 1
    %p152 = por %p150, %p151
    %p154 = scmp.ne.s32.totalorder %s139, %s153
    %p155 = scmp.eq.s32.totalorder %s30, 0
    %p156 = por %p154, %p155
    %s158 = sadd.s32 %s157, 1
    %p161 = scmp.eq.s32.totalorder %s24, 1
    %p162 = scmp.ne.s32.totalorder %s157, %s159
    %p163 = scmp.eq.s32.totalorder %s24, 0
    %p164 = por %p162, %p163
    %p165 = scmp.ne.s32.totalorder %s157, %s159
    %p166 = scmp.eq.s32.totalorder %s29, 1
    %p167 = por %p165, %p166
    %p168 = scmp.ne.s32.totalorder %s159, %s160
    %p169 = scmp.eq.s32.totalorder %s29, 0
    %p170 = por %p168, %p169
    %p171 = scmp.ne.s32.totalorder %s159, %s160
    %p172 = scmp.eq.s32.totalorder %s30, 1
    %p173 = por %p171, %p172
    %p175 = scmp.ne.s32.totalorder %s160, %s174
    %p176 = scmp.eq.s32.totalorder %s30, 0
    %p177 = por %p175, %p176
    %s179 = sadd.s32 %s178, 1
    %p182 = scmp.eq.s32.totalorder %s24, 1
    %p183 = scmp.ne.s32.totalorder %s178, %s180
    %p184 = scmp.eq.s32.totalorder %s24, 0
    %p185 = por %p183, %p184
    %p186 = scmp.ne.s32.totalorder %s178, %s180
    %p187 = scmp.eq.s32.totalorder %s29, 1
    %p188 = por %p186, %p187
    %p189 = scmp.ne.s32.totalorder %s180, %s181
    %p190 = scmp.eq.s32.totalorder %s29, 0
    %p191 = por %p189, %p190
    %p192 = scmp.ne.s32.totalorder %s180, %s181
    %p193 = scmp.eq.s32.totalorder %s30, 1
    %p194 = por %p192, %p193
    %p196 = scmp.ne.s32.totalorder %s181, %s195
    %p197 = scmp.eq.s32.totalorder %s30, 0
    %p198 = por %p196, %p197
    %s200 = sadd.s32 %s199, 1
    %p203 = scmp.eq.s32.totalorder %s24, 1
    %p204 = scmp.ne.s32.totalorder %s199, %s201
    %p205 = scmp.eq.s32.totalorder %s24, 0
    %p206 = por %p204, %p205
    %p207 = scmp.ne.s32.totalorder %s199, %s201
    %p208 = scmp.eq.s32.totalorder %s29, 1
    %p209 = por %p207, %p208
    %p210 = scmp.ne.s32.totalorder %s201, %s202
    %p211 = scmp.eq.s32.totalorder %s29, 0
    %p212 = por %p210, %p211
    %p213 = scmp.ne.s32.totalorder %s201, %s202
    %p214 = scmp.eq.s32.totalorder %s30, 1
    %p215 = por %p213, %p214
    %p217 = scmp.ne.s32.totalorder %s202, %s216
    %p218 = scmp.eq.s32.totalorder %s30, 0
    %p219 = por %p217, %p218
    %s221 = sadd.s32 %s220, 1
    %p224 = scmp.eq.s32.totalorder %s24, 1
    %p225 = scmp.ne.s32.totalorder %s220, %s222
    %p226 = scmp.eq.s32.totalorder %s24, 0
    %p227 = por %p225, %p226
    %p228 = scmp.ne.s32.totalorder %s220, %s222
    %p229 = scmp.eq.s32.totalorder %s29, 1
    %p230 = por %p228, %p229
    %p231 = scmp.ne.s32.totalorder %s222, %s223
    %p232 = scmp.eq.s32.totalorder %s29, 0
    %p233 = por %p231, %p232
    %p234 = scmp.ne.s32.totalorder %s222, %s223
    %p235 = scmp.eq.s32.totalorder %s30, 1
    %p236 = por %p234, %p235
    %p238 = scmp.ne.s32.totalorder %s223, %s237
    %p239 = scmp.eq.s32.totalorder %s30, 0
    %p240 = por %p238, %p239
    %s242 = sadd.s32 %s241, 1
    %p245 = scmp.eq.s32.totalorder %s24, 1
    %p246 = scmp.ne.s32.totalorder %s241, %s243
    %p247 = scmp.eq.s32.totalorder %s24, 0
    %p248 = por %p246, %p247
    %p249 = scmp.ne.s32.totalorder %s241, %s243
    %p250 = scmp.eq.s32.totalorder %s29, 1
    %p251 = por %p249, %p250
    %p252 = scmp.ne.s32.totalorder %s243, %s244
    %p253 = scmp.eq.s32.totalorder %s29, 0
    %p254 = por %p252, %p253
    %p255 = scmp.ne.s32.totalorder %s243, %s244
    %p256 = scmp.eq.s32.totalorder %s30, 1
    %p257 = por %p255, %p256
    %p259 = scmp.ne.s32.totalorder %s244, %s258
    %p260 = scmp.eq.s32.totalorder %s30, 0
    %p261 = por %p259, %p260
    %s263 = sadd.s32 %s262, 1
    %p266 = scmp.eq.s32.totalorder %s24, 1
    %p267 = scmp.ne.s32.totalorder %s262, %s264
    %p268 = scmp.eq.s32.totalorder %s24, 0
    %p269 = por %p267, %p268
    %p270 = scmp.ne.s32.totalorder %s262, %s264
    %p271 = scmp.eq.s32.totalorder %s29, 1
    %p272 = por %p270, %p271
    %p273 = scmp.ne.s32.totalorder %s264, %s265
    %p274 = scmp.eq.s32.totalorder %s29, 0
    %p275 = por %p273, %p274
    %p276 = scmp.ne.s32.totalorder %s264, %s265
    %p277 = scmp.eq.s32.totalorder %s30, 1
    %p278 = por %p276, %p277
    %p280 = scmp.ne.s32.totalorder %s265, %s279
    %p281 = scmp.eq.s32.totalorder %s30, 0
    %p282 = por %p280, %p281
    %s284 = sadd.s32 %s283, 1
    %p287 = scmp.eq.s32.totalorder %s24, 1
    %p288 = scmp.ne.s32.totalorder %s283, %s285
    %p289 = scmp.eq.s32.totalorder %s24, 0
    %p290 = por %p288, %p289
    %p291 = scmp.ne.s32.totalorder %s283, %s285
    %p292 = scmp.eq.s32.totalorder %s29, 1
    %p293 = por %p291, %p292
    %p294 = scmp.ne.s32.totalorder %s285, %s286
    %p295 = scmp.eq.s32.totalorder %s29, 0
    %p296 = por %p294, %p295
    %p297 = scmp.ne.s32.totalorder %s285, %s286
    %p298 = scmp.eq.s32.totalorder %s30, 1
    %p299 = por %p297, %p298
    %p301 = scmp.ne.s32.totalorder %s286, %s300
    %p302 = scmp.eq.s32.totalorder %s30, 0
    %p303 = por %p301, %p302
    %s305 = sadd.s32 %s304, 1
    %p308 = scmp.eq.s32.totalorder %s24, 1
    %p309 = scmp.ne.s32.totalorder %s304, %s306
    %p310 = scmp.eq.s32.totalorder %s24, 0
    %p311 = por %p309, %p310
    %p312 = scmp.ne.s32.totalorder %s304, %s306
    %p313 = scmp.eq.s32.totalorder %s29, 1
    %p314 = por %p312, %p313
    %p315 = scmp.ne.s32.totalorder %s306, %s307
    %p316 = scmp.eq.s32.totalorder %s29, 0
    %p317 = por %p315, %p316
    %p318 = scmp.ne.s32.totalorder %s306, %s307
    %p319 = scmp.eq.s32.totalorder %s30, 1
    %p320 = por %p318, %p319
    %p322 = scmp.ne.s32.totalorder %s307, %s321
    %p323 = scmp.eq.s32.totalorder %s30, 0
    %p324 = por %p322, %p323
    %s326 = sadd.s32 %s325, 1
    %p329 = scmp.eq.s32.totalorder %s24, 1
    %p330 = scmp.ne.s32.totalorder %s325, %s327
    %p331 = scmp.eq.s32.totalorder %s24, 0
    %p332 = por %p330, %p331
    %p333 = scmp.ne.s32.totalorder %s325, %s327
    %p334 = scmp.eq.s32.totalorder %s29, 1
    %p335 = por %p333, %p334
    %p336 = scmp.ne.s32.totalorder %s327, %s328
    %p337 = scmp.eq.s32.totalorder %s29, 0
    %p338 = por %p336, %p337
    %p339 = scmp.ne.s32.totalorder %s327, %s328
    %p340 = scmp.eq.s32.totalorder %s30, 1
    %p341 = por %p339, %p340
    %p343 = scmp.ne.s32.totalorder %s328, %s342
    %p344 = scmp.eq.s32.totalorder %s30, 0
    %p345 = por %p343, %p344
    %s347 = sadd.s32 %s346, 1
    %p350 = scmp.eq.s32.totalorder %s24, 1
    %p351 = scmp.ne.s32.totalorder %s346, %s348
    %p352 = scmp.eq.s32.totalorder %s24, 0
    %p353 = por %p351, %p352
    %p354 = scmp.ne.s32.totalorder %s346, %s348
    %p355 = scmp.eq.s32.totalorder %s29, 1
    %p356 = por %p354, %p355
    %p357 = scmp.ne.s32.totalorder %s348, %s349
    %p358 = scmp.eq.s32.totalorder %s29, 0
    %p359 = por %p357, %p358
    %p360 = scmp.ne.s32.totalorder %s348, %s349
    %p361 = scmp.eq.s32.totalorder %s30, 1
    %p362 = por %p360, %p361
    %p364 = scmp.ne.s32.totalorder %s349, %s363
    %p365 = scmp.eq.s32.totalorder %s30, 0
    %p366 = por %p364, %p365
    %s368 = sadd.s32 %s367, 1
    %p371 = scmp.eq.s32.totalorder %s24, 1
    %p372 = scmp.ne.s32.totalorder %s367, %s369
    %p373 = scmp.eq.s32.totalorder %s24, 0
    %p374 = por %p372, %p373
    %p375 = scmp.ne.s32.totalorder %s367, %s369
    %p376 = scmp.eq.s32.totalorder %s29, 1
    %p377 = por %p375, %p376
    %p378 = scmp.ne.s32.totalorder %s369, %s370
    %p379 = scmp.eq.s32.totalorder %s29, 0
    %p380 = por %p378, %p379
    %p381 = scmp.ne.s32.totalorder %s369, %s370
    %p382 = scmp.eq.s32.totalorder %s30, 1
    %p383 = por %p381, %p382
    %p385 = scmp.ne.s32.totalorder %s370, %s384
    %p386 = scmp.eq.s32.totalorder %s30, 0
    %p387 = por %p385, %p386
    %s389 = sadd.s32 %s388, 1
    %p392 = scmp.eq.s32.totalorder %s24, 1
    %p393 = scmp.ne.s32.totalorder %s388, %s390
    %p394 = scmp.eq.s32.totalorder %s24, 0
    %p395 = por %p393, %p394
    %p396 = scmp.ne.s32.totalorder %s388, %s390
    %p397 = scmp.eq.s32.totalorder %s29, 1
    %p398 = por %p396, %p397
    %p399 = scmp.ne.s32.totalorder %s390, %s391
    %p400 = scmp.eq.s32.totalorder %s29, 0
    %p401 = por %p399, %p400
    %p402 = scmp.ne.s32.totalorder %s390, %s391
    %p403 = scmp.eq.s32.totalorder %s30, 1
    %p404 = por %p402, %p403
    %p406 = scmp.ne.s32.totalorder %s391, %s405
    %p407 = scmp.eq.s32.totalorder %s30, 0
    %p408 = por %p406, %p407
    %s410 = sadd.s32 %s409, 1
    %p413 = scmp.eq.s32.totalorder %s24, 1
    %p414 = scmp.ne.s32.totalorder %s409, %s411
    %p415 = scmp.eq.s32.totalorder %s24, 0
    %p416 = por %p414, %p415
    %p417 = scmp.ne.s32.totalorder %s409, %s411
    %p418 = scmp.eq.s32.totalorder %s29, 1
    %p419 = por %p417, %p418
    %p420 = scmp.ne.s32.totalorder %s411, %s412
    %p421 = scmp.eq.s32.totalorder %s29, 0
    %p422 = por %p420, %p421
    %p423 = scmp.ne.s32.totalorder %s411, %s412
    %p424 = scmp.eq.s32.totalorder %s30, 1
    %p425 = por %p423, %p424
    %p427 = scmp.ne.s32.totalorder %s412, %s426
    %p428 = scmp.eq.s32.totalorder %s30, 0
    %p429 = por %p427, %p428
    %s430 = ssub.s32 %s24, %s31
    %p431 = scmp.eq.s32.totalorder %s430, 0
    %s433 = sadd.s32 %s432, 1
    %s434 = scalar_select %p431, %s432, %s433
    %p437 = pneg %p431
    %p438 = scmp.eq.s32.totalorder %s24, 1
    %p439 = por %p437, %p438
    %p440 = scmp.ne.s32.totalorder %s432, %s435
    %p441 = scmp.eq.s32.totalorder %s24, 0
    %p442 = por %p440, %p441
    %p443 = scmp.ne.s32.totalorder %s432, %s435
    %p444 = scmp.eq.s32.totalorder %s29, 1
    %p445 = por %p443, %p444
    %p446 = scmp.ne.s32.totalorder %s435, %s436
    %p447 = scmp.eq.s32.totalorder %s29, 0
    %p448 = por %p446, %p447
    %p449 = scmp.ne.s32.totalorder %s435, %s436
    %p450 = scmp.eq.s32.totalorder %s30, 1
    %p451 = por %p449, %p450
    %p453 = scmp.ne.s32.totalorder %s436, %s452
    %p454 = scmp.eq.s32.totalorder %s30, 0
    %p455 = por %p453, %p454
    %p456 = scmp.le.s32.totalorder 1, %s24
    %p457 = scmp.lt.s32.totalorder %s24, 3
    %p458 = pnand %p456, %p457
    %p459 = pneg %p458
    // Predicated region
    $region9: #{_lambda_.1} parent=5 // pred_check
      _
    $region10: #{_lambda_.1} parent=5 // pred_check_branch
      %461 = sbr.rel (%p458) target = $region12
    $region11: #{_lambda_.1} parent=5 // pred_region
      %s462 = ssub.s32 %s24, 1
      // Predicated region
      $region13: #{_lambda_.1} parent=11 // pred_check
        %p463 = pneg %p149
      $region14: #{_lambda_.1} parent=11 // pred_check_branch
        %465 = sbr.rel (%p463) target = $region16
      $region15: #{_lambda_.1} parent=11 // pred_region
        _
      $region16: #{_lambda_.1} parent=11 // pred_fallthru
        _
      // Predicated region
      $region17: #{_lambda_.1} parent=11 // pred_check
        %p466 = pneg %p170
      $region18: #{_lambda_.1} parent=11 // pred_check_branch
        %468 = sbr.rel (%p466) target = $region20
      $region19: #{_lambda_.1} parent=11 // pred_region
        _
      $region20: #{_lambda_.1} parent=11 // pred_fallthru
        _
      // Predicated region
      $region21: #{_lambda_.1} parent=11 // pred_check
        %p469 = pneg %p191
      $region22: #{_lambda_.1} parent=11 // pred_check_branch
        %471 = sbr.rel (%p469) target = $region24
      $region23: #{_lambda_.1} parent=11 // pred_region
        _
      $region24: #{_lambda_.1} parent=11 // pred_fallthru
        _
      // Predicated region
      $region25: #{_lambda_.1} parent=11 // pred_check
        %p472 = pneg %p212
      $region26: #{_lambda_.1} parent=11 // pred_check_branch
        %474 = sbr.rel (%p472) target = $region28
      $region27: #{_lambda_.1} parent=11 // pred_region
        _
      $region28: #{_lambda_.1} parent=11 // pred_fallthru
        _
      // Predicated region
      $region29: #{_lambda_.1} parent=11 // pred_check
        %p475 = pneg %p233
      $region30: #{_lambda_.1} parent=11 // pred_check_branch
        %477 = sbr.rel (%p475) target = $region32
      $region31: #{_lambda_.1} parent=11 // pred_region
        _
      $region32: #{_lambda_.1} parent=11 // pred_fallthru
        _
      // Predicated region
      $region33: #{_lambda_.1} parent=11 // pred_check
        %p478 = pneg %p254
      $region34: #{_lambda_.1} parent=11 // pred_check_branch
        %480 = sbr.rel (%p478) target = $region36
      $region35: #{_lambda_.1} parent=11 // pred_region
        _
      $region36: #{_lambda_.1} parent=11 // pred_fallthru
        _
      // Predicated region
      $region37: #{_lambda_.1} parent=11 // pred_check
        %p481 = pneg %p275
      $region38: #{_lambda_.1} parent=11 // pred_check_branch
        %483 = sbr.rel (%p481) target = $region40
      $region39: #{_lambda_.1} parent=11 // pred_region
        _
      $region40: #{_lambda_.1} parent=11 // pred_fallthru
        _
      // Predicated region
      $region41: #{_lambda_.1} parent=11 // pred_check
        %p484 = pneg %p296
      $region42: #{_lambda_.1} parent=11 // pred_check_branch
        %486 = sbr.rel (%p484) target = $region44
      $region43: #{_lambda_.1} parent=11 // pred_region
        _
      $region44: #{_lambda_.1} parent=11 // pred_fallthru
        _
      // Predicated region
      $region45: #{_lambda_.1} parent=11 // pred_check
        %p487 = pneg %p317
      $region46: #{_lambda_.1} parent=11 // pred_check_branch
        %489 = sbr.rel (%p487) target = $region48
      $region47: #{_lambda_.1} parent=11 // pred_region
        _
      $region48: #{_lambda_.1} parent=11 // pred_fallthru
        _
      // Predicated region
      $region49: #{_lambda_.1} parent=11 // pred_check
        %p490 = pneg %p338
      $region50: #{_lambda_.1} parent=11 // pred_check_branch
        %492 = sbr.rel (%p490) target = $region52
      $region51: #{_lambda_.1} parent=11 // pred_region
        _
      $region52: #{_lambda_.1} parent=11 // pred_fallthru
        _
      // Predicated region
      $region53: #{_lambda_.1} parent=11 // pred_check
        %p493 = pneg %p359
      $region54: #{_lambda_.1} parent=11 // pred_check_branch
        %495 = sbr.rel (%p493) target = $region56
      $region55: #{_lambda_.1} parent=11 // pred_region
        _
      $region56: #{_lambda_.1} parent=11 // pred_fallthru
        _
      // Predicated region
      $region57: #{_lambda_.1} parent=11 // pred_check
        %p496 = pneg %p380
      $region58: #{_lambda_.1} parent=11 // pred_check_branch
        %498 = sbr.rel (%p496) target = $region60
      $region59: #{_lambda_.1} parent=11 // pred_region
        _
      $region60: #{_lambda_.1} parent=11 // pred_fallthru
        _
      // Predicated region
      $region61: #{_lambda_.1} parent=11 // pred_check
        %p499 = pneg %p401
      $region62: #{_lambda_.1} parent=11 // pred_check_branch
        %501 = sbr.rel (%p499) target = $region64
      $region63: #{_lambda_.1} parent=11 // pred_region
        _
      $region64: #{_lambda_.1} parent=11 // pred_fallthru
        _
      // Predicated region
      $region65: #{_lambda_.1} parent=11 // pred_check
        %p502 = pneg %p422
      $region66: #{_lambda_.1} parent=11 // pred_check_branch
        %504 = sbr.rel (%p502) target = $region68
      $region67: #{_lambda_.1} parent=11 // pred_region
        _
      $region68: #{_lambda_.1} parent=11 // pred_fallthru
        _
    $region12: #{_lambda_.1} parent=5 // pred_fallthru
      _
    %p505 = scmp.lt.s32.totalorder %s24, 2
    // Predicated region
    $region69: #{_lambda_.1} parent=5 // pred_check
      %p506 = pneg %p505
    $region70: #{_lambda_.1} parent=5 // pred_check_branch
      %508 = sbr.rel (%p506) target = $region72
    $region71: #{_lambda_.1} parent=5 // pred_region
      // Predicated region
      $region73: #{_lambda_.1} parent=71 // pred_check
        %p509 = pneg %p44
      $region74: #{_lambda_.1} parent=71 // pred_check_branch
        %511 = sbr.rel (%p509) target = $region76
      $region75: #{_lambda_.1} parent=71 // pred_region
        %p512 = scmp.lt.s32.totalorder %s24, 1
        %s513 = scalar_select %p512, %s24, 1
        %s514 = smul.addr %s513, 4
        %s515 = smul.addr %s514, 4
        %s516 = scalar_lea.vmem %s0, %s515
      $region76: #{_lambda_.1} parent=71 // pred_fallthru
        _
      // Predicated region
      $region77: #{_lambda_.1} parent=71 // pred_check
        %p517 = pneg %p70
      $region78: #{_lambda_.1} parent=71 // pred_check_branch
        %519 = sbr.rel (%p517) target = $region80
      $region79: #{_lambda_.1} parent=71 // pred_region
        %p520 = scmp.lt.s32.totalorder %s24, 1
        %s521 = scalar_select %p520, %s24, 1
        %s522 = smul.addr %s521, 2
        %s523 = smul.addr %s522, 4
        %s524 = scalar_lea.vmem %s1, %s523
      $region80: #{_lambda_.1} parent=71 // pred_fallthru
        _
      // Predicated region
      $region81: #{_lambda_.1} parent=71 // pred_check
        %p525 = pneg %p96
      $region82: #{_lambda_.1} parent=71 // pred_check_branch
        %527 = sbr.rel (%p525) target = $region84
      $region83: #{_lambda_.1} parent=71 // pred_region
        %p528 = scmp.lt.s32.totalorder %s24, 1
        %s529 = scalar_select %p528, %s24, 1
        %s530 = smul.addr %s529, 2
        %s531 = smul.addr %s530, 8
        %s532 = scalar_lea.vmem %s2, %s531
      $region84: #{_lambda_.1} parent=71 // pred_fallthru
        _
      // Predicated region
      $region85: #{_lambda_.1} parent=71 // pred_check
        %p533 = pneg %p122
      $region86: #{_lambda_.1} parent=71 // pred_check_branch
        %535 = sbr.rel (%p533) target = $region88
      $region87: #{_lambda_.1} parent=71 // pred_region
        %p536 = scmp.lt.s32.totalorder %s24, 1
        %s537 = scalar_select %p536, %s24, 1
        %s538 = smul.addr %s537, 2
        %s539 = smul.addr %s538, 4
        %s540 = scalar_lea.vmem %s3, %s539
      $region88: #{_lambda_.1} parent=71 // pred_fallthru
        _
    $region72: #{_lambda_.1} parent=5 // pred_fallthru
      _
    %p541 = scmp.le.s32.totalorder 1, %s24
    %p542 = scmp.lt.s32.totalorder %s24, 3
    %p543 = pnand %p541, %p542
    %p544 = pneg %p543
    // Predicated region
    $region89: #{_lambda_.1} parent=5 // pred_check
      _
    $region90: #{_lambda_.1} parent=5 // pred_check_branch
      %546 = sbr.rel (%p543) target = $region92
    $region91: #{_lambda_.1} parent=5 // pred_region
      %s547 = ssub.s32 %s24, 1
      %p548 = scmp.lt.s32.totalorder %s29, 1
      %s549 = scalar_select %p548, %s29, 1
      %s550 = smul.addr %s549, 4
      %s551 = smul.addr %s550, 4
      %s552 = scalar_lea.vmem %s0, %s551
      %p553 = pneg %p50
      %p554 = pneg %p47
      %p555 = scmp.lt.s32.totalorder %s29, 1
      %s556 = scalar_select %p555, %s29, 1
      %s557 = smul.addr %s556, 2
      %s558 = smul.addr %s557, 4
      %s559 = scalar_lea.vmem %s1, %s558
      %p560 = pneg %p76
      %p561 = pneg %p73
      %p562 = scmp.lt.s32.totalorder %s29, 1
      %s563 = scalar_select %p562, %s29, 1
      %s564 = smul.addr %s563, 2
      %s565 = smul.addr %s564, 8
      %s566 = scalar_lea.vmem %s2, %s565
      %p567 = pneg %p102
      %p568 = pneg %p99
      %p569 = scmp.lt.s32.totalorder %s29, 1
      %s570 = scalar_select %p569, %s29, 1
      %s571 = smul.addr %s570, 2
      %s572 = smul.addr %s571, 4
      %s573 = scalar_lea.vmem %s3, %s572
      %p574 = pneg %p128
      %p575 = pneg %p125
      %p576 = pneg %p149
      %p577 = pneg %p146
      %p578 = pneg %p170
      %p579 = pneg %p167
      %p580 = pneg %p191
      %p581 = pneg %p188
      %p582 = pneg %p212
      %p583 = pneg %p209
      %p584 = pneg %p233
      %p585 = pneg %p230
      %p586 = pneg %p254
      %p587 = pneg %p251
      %p588 = pneg %p275
      %p589 = pneg %p272
      %p590 = pneg %p296
      %p591 = pneg %p293
      %p592 = pneg %p317
      %p593 = pneg %p314
      %p594 = pneg %p338
      %p595 = pneg %p335
      %p596 = pneg %p359
      %p597 = pneg %p356
      %p598 = pneg %p380
      %p599 = pneg %p377
      %p600 = pneg %p401
      %p601 = pneg %p398
      %p602 = pneg %p422
      %p603 = pneg %p419
      %p604 = pneg %p448
      %p605 = pneg %p445
      %p606 = scmp.lt.s32.totalorder %s29, 1
      %s607 = scalar_select %p606, %s29, 1
      %s608 = scalar_lea.vmem %s18, %s607
      %p609 = scmp.lt.s32.totalorder %s29, 1
      %s610 = scalar_select %p609, %s29, 1
      %s611 = smul.addr %s610, 4
      %s612 = smul.addr %s611, 4
      %s613 = scalar_lea.vmem %s0, %s612
      %p614 = scmp.lt.s32.totalorder %s29, 1
      %s615 = scalar_select %p614, %s29, 1
      %s616 = smul.addr %s615, 2
      %s617 = smul.addr %s616, 4
      %s618 = scalar_lea.vmem %s1, %s617
      %p619 = scmp.lt.s32.totalorder %s29, 1
      %s620 = scalar_select %p619, %s29, 1
      %s621 = smul.addr %s620, 2
      %s622 = smul.addr %s621, 8
      %s623 = scalar_lea.vmem %s2, %s622
      %p624 = scmp.lt.s32.totalorder %s29, 1
      %s625 = scalar_select %p624, %s29, 1
      %s626 = smul.addr %s625, 2
      %s627 = smul.addr %s626, 4
      %s628 = scalar_lea.vmem %s3, %s627
      %p629 = scmp.lt.s32.totalorder %s29, 1
      %s630 = scalar_select %p629, %s29, 1
      %s631 = scalar_lea.vmem %s18, %s630
      %v633 = vlaneseq
      %v634 = vand.u32 %v633, 127
      %v635 = vld [vmem:[%s618] sm:$0xf]
      %v636 = vld [vmem:[%s618 + $0x4] sm:$0xf]
      %v637 = vld [vmem:[%s6] sm:$0xf]
      %v640 = vunpack.c.l.b16 %v635
      %v641 = vunpack.c.l.b16 %v636
      %v642 = vpack.c.b16 %v641, %v640
      %vm644 = vcmask 130048
      %v646 = vsel %vm644, %v637, 0
      %648 = vmatpush.bf16.msra.mxu0 0
      %649 = vmatpush.bf16.msra.mxu0 0
      %650 = vmatpush.bf16.msra.mxu0 0
      %651 = vmatpush.bf16.msra.mxu0 0
      %652 = vmatpush.bf16.msra.mxu0 0
      %653 = vmatpush.bf16.msra.mxu0 0
      %654 = vmatpush.bf16.msra.mxu0 0
      %655 = vmatpush.bf16.msra.mxu0 %v642
      %656 = vmatmul.bf16.gmra.mxu0 %v646
      %v657 = vpop.f32.mrf.mxu0
      %v658 = vadd.f32 0.0, %v657
      %v659 = vpop.f32.mrf.mxu0
      %660 = vdwg.mxu0
      %v661 = vpack.c.bf16 %v658, %v658
      %v662 = vld [vmem:[%s7] sm:$0xf]
      %v663 = vld [vmem:[%s7 + $0x4] sm:$0xf]
      %v666 = vunpack.c.l.b16 %v662
      %v667 = vunpack.c.l.b16 %v663
      %v668 = vpack.c.b16 %v667, %v666
      %v671 = vsel %vm644, %v661, 0
      %673 = vmatpush.bf16.msra.mxu0 0
      %674 = vmatpush.bf16.msra.mxu0 0
      %675 = vmatpush.bf16.msra.mxu0 0
      %676 = vmatpush.bf16.msra.mxu0 0
      %677 = vmatpush.bf16.msra.mxu0 0
      %678 = vmatpush.bf16.msra.mxu0 0
      %679 = vmatpush.bf16.msra.mxu0 0
      %680 = vmatpush.bf16.msra.mxu0 %v668
      %681 = vmatmul.bf16.gmra.mxu0 %v671
      %v682 = vpop.f32.mrf.mxu0
      %v683 = vadd.f32 0.0, %v682
      %v684 = vpop.f32.mrf.mxu0
      %685 = vdwg.mxu0
      %vm686 = vcmp.gt.f32.partialorder %v683, 0.0
      %v687 = vsel %vm686, 1, 0
      %v688 = vcvt.s32.f32 %v687
      %vm689 = vcmask 64512
      %v690 = vsel %vm689, %v688, 0.0
      %691 = vadd.xlane.f32.xlu0 %v690
      %v692 = vpop.xlane.xlu0 %691
      %v693 = vrot.slane %v692, 4
      %v694 = vadd.f32 %v692, %v693
      %v695 = vrot.slane %v694, 2
      %v696 = vadd.f32 %v694, %v695
      %v697 = vrot.slane %v696, 1
      %v698 = vadd.f32 %v696, %v697
      %s699 = vtos %v698
      %v700 = vpack.c.bf16 %v688, %v688
      %v701 = vld [vmem:[%s9] sm:$0xf]
      %v703 = vsel %vm689, %v700, 0
      %vm705 = vcmask 1043456
      %v707 = vsel %vm705, %v701, 0
      %709 = vmatpush.bf16.msra.mxu0 0
      %710 = vmatpush.bf16.msra.mxu0 0
      %711 = vmatpush.bf16.msra.mxu0 0
      %712 = vmatpush.bf16.msra.mxu0 0
      %713 = vmatpush.bf16.msra.mxu0 0
      %714 = vmatpush.bf16.msra.mxu0 0
      %715 = vmatpush.bf16.msra.mxu0 0
      %716 = vmatpush.bf16.msra.mxu0 %v707
      %717 = vmatmul.bf16.gmra.mxu0 %v703
      %v718 = vpop.f32.mrf.mxu0
      %v719 = vadd.f32 0.0, %v718
      %v720 = vpop.f32.mrf.mxu0
      %721 = vdwg.mxu0
      %v722 = vld [vmem:[%s8] sm:$0xf]
      %v723 = vpack.c.bf16 %v719, %v719
      %v725 = vsel %vm689, %v722, 0
      %v728 = vsel %vm705, %v723, 0
      %730 = vmatpush.bf16.msra.mxu0 0
      %731 = vmatpush.bf16.msra.mxu0 0
      %732 = vmatpush.bf16.msra.mxu0 0
      %733 = vmatpush.bf16.msra.mxu0 0
      %734 = vmatpush.bf16.msra.mxu0 0
      %735 = vmatpush.bf16.msra.mxu0 0
      %736 = vmatpush.bf16.msra.mxu0 0
      %737 = vmatpush.bf16.msra.mxu0 %v728
      %738 = vmatmul.bf16.gmra.mxu0 %v725
      %v739 = vpop.f32.mrf.mxu0
      %v740 = vadd.f32 0.0, %v739
      %v741 = vpop.f32.mrf.mxu0
      %742 = vdwg.mxu0
      %v743 = vsel %vm689, %v740, 0.0
      %744 = vadd.xlane.f32.xlu0 %v743
      %v745 = vpop.xlane.xlu0 %744
      %v746 = vrot.slane %v745, 4
      %v747 = vadd.f32 %v745, %v746
      %v748 = vrot.slane %v747, 2
      %v749 = vadd.f32 %v747, %v748
      %v750 = vrot.slane %v749, 1
      %v751 = vadd.f32 %v749, %v750
      %s752 = vtos %v751
      %v753 = vld [vmem:[%s4] sm:$0xf]
      %v754 = vld [vmem:[%s613] sm:$0xf]
      %v755 = vld [vmem:[%s613 + $0x4] sm:$0xf]
      %v758 = vunpack.c.l.b16 %v754
      %v759 = vunpack.c.l.b16 %v755
      %v760 = vpack.c.b16 %v759, %v758
      %v763 = vsel %vm644, %v753, 0
      %765 = vmatpush.bf16.msra.mxu0 0
      %766 = vmatpush.bf16.msra.mxu0 0
      %767 = vmatpush.bf16.msra.mxu0 0
      %768 = vmatpush.bf16.msra.mxu0 0
      %769 = vmatpush.bf16.msra.mxu0 0
      %770 = vmatpush.bf16.msra.mxu0 0
      %771 = vmatpush.bf16.msra.mxu0 0
      %772 = vmatpush.bf16.msra.mxu0 %v760
      %773 = vmatmul.bf16.gmra.mxu0 %v763
      %v774 = vpop.f32.mrf.mxu0
      %v775 = vadd.f32 0.0, %v774
      %v776 = vpop.f32.mrf.mxu0
      %777 = vdwg.mxu0
      %v778 = vpack.c.bf16 %v775, %v775
      %v779 = vld [vmem:[%s5] sm:$0xf]
      %v780 = vld [vmem:[%s5 + $0x4] sm:$0xf]
      %v783 = vunpack.c.l.b16 %v779
      %v784 = vunpack.c.l.b16 %v780
      %v785 = vpack.c.b16 %v784, %v783
      %v788 = vsel %vm644, %v778, 0
      %790 = vmatpush.bf16.msra.mxu0 0
      %791 = vmatpush.bf16.msra.mxu0 0
      %792 = vmatpush.bf16.msra.mxu0 0
      %793 = vmatpush.bf16.msra.mxu0 0
      %794 = vmatpush.bf16.msra.mxu0 0
      %795 = vmatpush.bf16.msra.mxu0 0
      %796 = vmatpush.bf16.msra.mxu0 0
      %797 = vmatpush.bf16.msra.mxu0 %v785
      %798 = vmatmul.bf16.gmra.mxu0 %v788
      %v799 = vpop.f32.mrf.mxu0
      %v800 = vadd.f32 0.0, %v799
      %v801 = vpop.f32.mrf.mxu0
      %802 = vdwg.mxu0
      %v803 = vld [vmem:[%s623] sm:$0xff]
      %v804 = vsub.f32 %v800, %v803
      %s805 = scalar_lea.vmem %s613, 8
      %v806 = vld [vmem:[%s805] sm:$0xf]
      %v807 = vld [vmem:[%s805 + $0x4] sm:$0xf]
      %v810 = vunpack.c.l.b16 %v806
      %v811 = vunpack.c.l.b16 %v807
      %v812 = vpack.c.b16 %v811, %v810
      %814 = vmatpush.bf16.msra.mxu0 0
      %815 = vmatpush.bf16.msra.mxu0 0
      %816 = vmatpush.bf16.msra.mxu0 0
      %817 = vmatpush.bf16.msra.mxu0 0
      %818 = vmatpush.bf16.msra.mxu0 0
      %819 = vmatpush.bf16.msra.mxu0 0
      %820 = vmatpush.bf16.msra.mxu0 0
      %821 = vmatpush.bf16.msra.mxu0 %v812
      %822 = vmatmul.bf16.gmra.mxu0 %v763
      %v823 = vpop.f32.mrf.mxu0
      %v824 = vadd.f32 0.0, %v823
      %v825 = vpop.f32.mrf.mxu0
      %826 = vdwg.mxu0
      %v827 = vpack.c.bf16 %v824, %v824
      %v829 = vsel %vm644, %v827, 0
      %831 = vmatpush.bf16.msra.mxu0 0
      %832 = vmatpush.bf16.msra.mxu0 0
      %833 = vmatpush.bf16.msra.mxu0 0
      %834 = vmatpush.bf16.msra.mxu0 0
      %835 = vmatpush.bf16.msra.mxu0 0
      %836 = vmatpush.bf16.msra.mxu0 0
      %837 = vmatpush.bf16.msra.mxu0 0
      %838 = vmatpush.bf16.msra.mxu0 %v785
      %839 = vmatmul.bf16.gmra.mxu0 %v829
      %v840 = vpop.f32.mrf.mxu0
      %v841 = vadd.f32 0.0, %v840
      %v842 = vpop.f32.mrf.mxu0
      %843 = vdwg.mxu0
      %s844 = scalar_lea.vmem %s623, 8
      %v845 = vld [vmem:[%s844] sm:$0xff]
      %v846 = vsub.f32 %v841, %v845
      %v847 = vand.u32 2147483647, %v804
      %v848 = vand.u32 2147483647, %v846
      %v849 = vadd.f32 %v847, %v848
      %v850 = vadd.f32 %v849, 0.01
      %v851 = vlog2.pop %v850
      %v852 = vmul.f32 %v851, 0.6931472
      %v853 = vmul.f32 %v852, 0.4
      %v854 = vmul.f32 %v853, 1.442695
      %v855 = vpow.pop %v854
      %v856 = vsel %vm689, %v855, 0.0
      %857 = vadd.xlane.f32.xlu0 %v856
      %v858 = vpop.xlane.xlu0 %857
      %v859 = vrot.slane %v858, 4
      %v860 = vadd.f32 %v858, %v859
      %v861 = vrot.slane %v860, 2
      %v862 = vadd.f32 %v860, %v861
      %v863 = vrot.slane %v862, 1
      %v864 = vadd.f32 %v862, %v863
      %s865 = vtos %v864
      %v866 = vmul.f32 %v855, %v740
      %v867 = vsel %vm689, %v866, 0.0
      %868 = vadd.xlane.f32.xlu0 %v867
      %v869 = vpop.xlane.xlu0 %868
      %v870 = vrot.slane %v869, 4
      %v871 = vadd.f32 %v869, %v870
      %v872 = vrot.slane %v871, 2
      %v873 = vadd.f32 %v871, %v872
      %v874 = vrot.slane %v873, 1
      %v875 = vadd.f32 %v873, %v874
      %s876 = vtos %v875
      %vm877 = vcmp.eq.s32.totalorder %v634, 0
      %v878 = vstv %s865
      %v879 = vsel %vm877, %v878, 0.0
      %v880 = vadd.f32 %v879, 0.0
      %vm881 = vcmp.eq.s32.totalorder %v634, 1
      %v882 = vstv %s876
      %v883 = vsel %vm881, %v882, 0.0
      %v884 = vadd.f32 %v880, %v883
      %vm885 = vcmp.eq.s32.totalorder %v634, 2
      %v886 = vstv %s752
      %v887 = vsel %vm885, %v886, 0.0
      %v888 = vadd.f32 %v884, %v887
      %vm889 = vcmp.eq.s32.totalorder %v634, 3
      %v890 = vstv %s699
      %v891 = vsel %vm889, %v890, 0.0
      %v892 = vadd.f32 %v888, %v891
      %v893 = vld [vmem:[%s12] sm:$0x3]
      %v895 = vsel %vm644, %v893, 0
      %897 = vmatpush.bf16.msra.mxu0 0
      %898 = vmatpush.bf16.msra.mxu0 0
      %899 = vmatpush.bf16.msra.mxu0 0
      %900 = vmatpush.bf16.msra.mxu0 0
      %901 = vmatpush.bf16.msra.mxu0 0
      %902 = vmatpush.bf16.msra.mxu0 0
      %903 = vmatpush.bf16.msra.mxu0 0
      %904 = vmatpush.bf16.msra.mxu0 %v642
      %905 = vmatmul.bf16.gmra.mxu0 %v895
      %v906 = vpop.f32.mrf.mxu0
      %v907 = vadd.f32 0.0, %v906
      %v908 = vpop.f32.mrf.mxu0
      %909 = vdwg.mxu0
      %v910 = vpack.c.bf16 %v907, %v907
      %v911 = vld [vmem:[%s13] sm:$0xf]
      %v912 = vld [vmem:[%s13 + $0x4] sm:$0xf]
      %v915 = vunpack.c.l.b16 %v911
      %v916 = vunpack.c.l.b16 %v912
      %v917 = vpack.c.b16 %v916, %v915
      %v920 = vsel %vm644, %v910, 0
      %922 = vmatpush.bf16.msra.mxu0 0
      %923 = vmatpush.bf16.msra.mxu0 0
      %924 = vmatpush.bf16.msra.mxu0 0
      %925 = vmatpush.bf16.msra.mxu0 0
      %926 = vmatpush.bf16.msra.mxu0 0
      %927 = vmatpush.bf16.msra.mxu0 0
      %928 = vmatpush.bf16.msra.mxu0 0
      %929 = vmatpush.bf16.msra.mxu0 %v917
      %930 = vmatmul.bf16.gmra.mxu0 %v920
      %v931 = vpop.f32.mrf.mxu0
      %v932 = vadd.f32 0.0, %v931
      %v933 = vpop.f32.mrf.mxu0
      %934 = vdwg.mxu0
      %vm935 = vcmp.gt.f32.partialorder %v932, 0.0
      %v936 = vsel %vm935, 1, 0
      %v937 = vcvt.s32.f32 %v936
      %vm938 = vcmask 27648
      %v939 = vsel %vm938, %v937, 0.0
      %940 = vadd.xlane.f32.xlu0 %v939
      %v941 = vpop.xlane.xlu0 %940
      %v942 = vrot.slane %v941, 4
      %v943 = vadd.f32 %v941, %v942
      %v944 = vrot.slane %v943, 2
      %v945 = vadd.f32 %v943, %v944
      %v946 = vrot.slane %v945, 1
      %v947 = vadd.f32 %v945, %v946
      %s948 = vtos %v947
      %v949 = vpack.c.bf16 %v937, %v937
      %v950 = vld [vmem:[%s15] sm:$0x3]
      %vm951 = vcmask 31744
      %v953 = vsel %vm951, %v949, 0
      %vm955 = vcmask 1041408
      %v957 = vsel %vm955, %v950, 0
      %959 = vmatpush.bf16.msra.mxu0 0
      %960 = vmatpush.bf16.msra.mxu0 0
      %961 = vmatpush.bf16.msra.mxu0 0
      %962 = vmatpush.bf16.msra.mxu0 0
      %963 = vmatpush.bf16.msra.mxu0 0
      %964 = vmatpush.bf16.msra.mxu0 0
      %965 = vmatpush.bf16.msra.mxu0 0
      %966 = vmatpush.bf16.msra.mxu0 %v957
      %967 = vmatmul.bf16.gmra.mxu0 %v953
      %v968 = vpop.f32.mrf.mxu0
      %v969 = vadd.f32 0.0, %v968
      %v970 = vpop.f32.mrf.mxu0
      %971 = vdwg.mxu0
      %v972 = vld [vmem:[%s14] sm:$0x3]
      %v973 = vpack.c.bf16 %v969, %v969
      %v975 = vsel %vm951, %v972, 0
      %v978 = vsel %vm955, %v973, 0
      %980 = vmatpush.bf16.msra.mxu0 0
      %981 = vmatpush.bf16.msra.mxu0 0
      %982 = vmatpush.bf16.msra.mxu0 0
      %983 = vmatpush.bf16.msra.mxu0 0
      %984 = vmatpush.bf16.msra.mxu0 0
      %985 = vmatpush.bf16.msra.mxu0 0
      %986 = vmatpush.bf16.msra.mxu0 0
      %987 = vmatpush.bf16.msra.mxu0 %v978
      %988 = vmatmul.bf16.gmra.mxu0 %v975
      %v989 = vpop.f32.mrf.mxu0
      %v990 = vadd.f32 0.0, %v989
      %v991 = vpop.f32.mrf.mxu0
      %992 = vdwg.mxu0
      %v993 = vsel %vm938, %v990, 0.0
      %994 = vadd.xlane.f32.xlu0 %v993
      %v995 = vpop.xlane.xlu0 %994
      %v996 = vrot.slane %v995, 4
      %v997 = vadd.f32 %v995, %v996
      %v998 = vrot.slane %v997, 2
      %v999 = vadd.f32 %v997, %v998
      %v1000 = vrot.slane %v999, 1
      %v1001 = vadd.f32 %v999, %v1000
      %s1002 = vtos %v1001
      %v1003 = vld [vmem:[%s10] sm:$0x3]
      %v1005 = vsel %vm644, %v1003, 0
      %1007 = vmatpush.bf16.msra.mxu0 0
      %1008 = vmatpush.bf16.msra.mxu0 0
      %1009 = vmatpush.bf16.msra.mxu0 0
      %1010 = vmatpush.bf16.msra.mxu0 0
      %1011 = vmatpush.bf16.msra.mxu0 0
      %1012 = vmatpush.bf16.msra.mxu0 0
      %1013 = vmatpush.bf16.msra.mxu0 0
      %1014 = vmatpush.bf16.msra.mxu0 %v760
      %1015 = vmatmul.bf16.gmra.mxu0 %v1005
      %v1016 = vpop.f32.mrf.mxu0
      %v1017 = vadd.f32 0.0, %v1016
      %v1018 = vpop.f32.mrf.mxu0
      %1019 = vdwg.mxu0
      %v1020 = vpack.c.bf16 %v1017, %v1017
      %v1021 = vld [vmem:[%s11] sm:$0xf]
      %v1022 = vld [vmem:[%s11 + $0x4] sm:$0xf]
      %v1025 = vunpack.c.l.b16 %v1021
      %v1026 = vunpack.c.l.b16 %v1022
      %v1027 = vpack.c.b16 %v1026, %v1025
      %v1030 = vsel %vm644, %v1020, 0
      %1032 = vmatpush.bf16.msra.mxu0 0
      %1033 = vmatpush.bf16.msra.mxu0 0
      %1034 = vmatpush.bf16.msra.mxu0 0
      %1035 = vmatpush.bf16.msra.mxu0 0
      %1036 = vmatpush.bf16.msra.mxu0 0
      %1037 = vmatpush.bf16.msra.mxu0 0
      %1038 = vmatpush.bf16.msra.mxu0 0
      %1039 = vmatpush.bf16.msra.mxu0 %v1027
      %1040 = vmatmul.bf16.gmra.mxu0 %v1030
      %v1041 = vpop.f32.mrf.mxu0
      %v1042 = vadd.f32 0.0, %v1041
      %v1043 = vpop.f32.mrf.mxu0
      %1044 = vdwg.mxu0
      %v1045 = vld [vmem:[%s628] sm:$0xf]
      %v1046 = vsub.f32 %v1042, %v1045
      %1047 = vmatpush.bf16.msra.mxu0 0
      %1048 = vmatpush.bf16.msra.mxu0 0
      %1049 = vmatpush.bf16.msra.mxu0 0
      %1050 = vmatpush.bf16.msra.mxu0 0
      %1051 = vmatpush.bf16.msra.mxu0 0
      %1052 = vmatpush.bf16.msra.mxu0 0
      %1053 = vmatpush.bf16.msra.mxu0 0
      %1054 = vmatpush.bf16.msra.mxu0 %v812
      %1055 = vmatmul.bf16.gmra.mxu0 %v1005
      %v1056 = vpop.f32.mrf.mxu0
      %v1057 = vadd.f32 0.0, %v1056
      %v1058 = vpop.f32.mrf.mxu0
      %1059 = vdwg.mxu0
      %v1060 = vpack.c.bf16 %v1057, %v1057
      %v1062 = vsel %vm644, %v1060, 0
      %1064 = vmatpush.bf16.msra.mxu0 0
      %1065 = vmatpush.bf16.msra.mxu0 0
      %1066 = vmatpush.bf16.msra.mxu0 0
      %1067 = vmatpush.bf16.msra.mxu0 0
      %1068 = vmatpush.bf16.msra.mxu0 0
      %1069 = vmatpush.bf16.msra.mxu0 0
      %1070 = vmatpush.bf16.msra.mxu0 0
      %1071 = vmatpush.bf16.msra.mxu0 %v1027
      %1072 = vmatmul.bf16.gmra.mxu0 %v1062
      %v1073 = vpop.f32.mrf.mxu0
      %v1074 = vadd.f32 0.0, %v1073
      %v1075 = vpop.f32.mrf.mxu0
      %1076 = vdwg.mxu0
      %s1077 = scalar_lea.vmem %s628, 4
      %v1078 = vld [vmem:[%s1077] sm:$0xf]
      %v1079 = vsub.f32 %v1074, %v1078
      %v1080 = vand.u32 2147483647, %v1046
      %v1081 = vand.u32 2147483647, %v1079
      %v1082 = vadd.f32 %v1080, %v1081
      %v1083 = vadd.f32 %v1082, 0.01
      %v1084 = vlog2.pop %v1083
      %v1085 = vmul.f32 %v1084, 0.6931472
      %v1086 = vmul.f32 %v1085, 0.4
      %v1087 = vmul.f32 %v1086, 1.442695
      %v1088 = vpow.pop %v1087
      %v1089 = vsel %vm938, %v1088, 0.0
      %1090 = vadd.xlane.f32.xlu0 %v1089
      %v1091 = vpop.xlane.xlu0 %1090
      %v1092 = vrot.slane %v1091, 4
      %v1093 = vadd.f32 %v1091, %v1092
      %v1094 = vrot.slane %v1093, 2
      %v1095 = vadd.f32 %v1093, %v1094
      %v1096 = vrot.slane %v1095, 1
      %v1097 = vadd.f32 %v1095, %v1096
      %s1098 = vtos %v1097
      %v1099 = vmul.f32 %v1088, %v990
      %v1100 = vsel %vm938, %v1099, 0.0
      %1101 = vadd.xlane.f32.xlu0 %v1100
      %v1102 = vpop.xlane.xlu0 %1101
      %v1103 = vrot.slane %v1102, 4
      %v1104 = vadd.f32 %v1102, %v1103
      %v1105 = vrot.slane %v1104, 2
      %v1106 = vadd.f32 %v1104, %v1105
      %v1107 = vrot.slane %v1106, 1
      %v1108 = vadd.f32 %v1106, %v1107
      %s1109 = vtos %v1108
      %vm1110 = vcmp.eq.s32.totalorder %v634, 4
      %v1111 = vstv %s1098
      %v1112 = vsel %vm1110, %v1111, 0.0
      %v1113 = vadd.f32 %v892, %v1112
      %vm1114 = vcmp.eq.s32.totalorder %v634, 5
      %v1115 = vstv %s1109
      %v1116 = vsel %vm1114, %v1115, 0.0
      %v1117 = vadd.f32 %v1113, %v1116
      %vm1118 = vcmp.eq.s32.totalorder %v634, 6
      %v1119 = vstv %s1002
      %v1120 = vsel %vm1118, %v1119, 0.0
      %v1121 = vadd.f32 %v1117, %v1120
      %vm1122 = vcmp.eq.s32.totalorder %v634, 7
      %v1123 = vstv %s948
      %v1124 = vsel %vm1122, %v1123, 0.0
      %v1125 = vadd.f32 %v1121, %v1124
      %v1126 = vpack.c.bf16 %v803, %v803
      %v1127 = vld [vmem:[%s17] sm:$0xf]
      %v1129 = vsel %vm689, %v1126, 0
      %v1132 = vsel %vm705, %v1127, 0
      %1134 = vmatpush.bf16.msra.mxu0 0
      %1135 = vmatpush.bf16.msra.mxu0 0
      %1136 = vmatpush.bf16.msra.mxu0 0
      %1137 = vmatpush.bf16.msra.mxu0 0
      %1138 = vmatpush.bf16.msra.mxu0 0
      %1139 = vmatpush.bf16.msra.mxu0 0
      %1140 = vmatpush.bf16.msra.mxu0 0
      %1141 = vmatpush.bf16.msra.mxu0 %v1132
      %1142 = vmatmul.bf16.gmra.mxu0 %v1129
      %v1143 = vpop.f32.mrf.mxu0
      %v1144 = vadd.f32 0.0, %v1143
      %v1145 = vpop.f32.mrf.mxu0
      %1146 = vdwg.mxu0
      %v1147 = vpack.c.bf16 %v1144, %v1144
      %v1148 = vpack.c.bf16 %v845, %v845
      %v1150 = vsel %vm689, %v1148, 0
      %1152 = vmatpush.bf16.msra.mxu0 0
      %1153 = vmatpush.bf16.msra.mxu0 0
      %1154 = vmatpush.bf16.msra.mxu0 0
      %1155 = vmatpush.bf16.msra.mxu0 0
      %1156 = vmatpush.bf16.msra.mxu0 0
      %1157 = vmatpush.bf16.msra.mxu0 0
      %1158 = vmatpush.bf16.msra.mxu0 0
      %1159 = vmatpush.bf16.msra.mxu0 %v1132
      %1160 = vmatmul.bf16.gmra.mxu0 %v1150
      %v1161 = vpop.f32.mrf.mxu0
      %v1162 = vadd.f32 0.0, %v1161
      %v1163 = vpop.f32.mrf.mxu0
      %1164 = vdwg.mxu0
      %v1165 = vpack.c.bf16 %v1162, %v1162
      %v1166 = vld [vmem:[%s16] sm:$0xf]
      %v1167 = vld [vmem:[%s16 + $0x4] sm:$0xf]
      %v1170 = vunpack.c.l.b16 %v1166
      %v1171 = vunpack.c.l.b16 %v1167
      %v1172 = vpack.c.b16 %v1171, %v1170
      %v1174 = vsel %vm689, %v1172, 0
      %v1177 = vsel %vm705, %v1147, 0
      %1179 = vmatpush.bf16.msra.mxu0 0
      %1180 = vmatpush.bf16.msra.mxu0 0
      %1181 = vmatpush.bf16.msra.mxu0 0
      %1182 = vmatpush.bf16.msra.mxu0 0
      %1183 = vmatpush.bf16.msra.mxu0 0
      %1184 = vmatpush.bf16.msra.mxu0 0
      %1185 = vmatpush.bf16.msra.mxu0 0
      %1186 = vmatpush.bf16.msra.mxu0 %v1177
      %1187 = vmatmul.bf16.gmra.mxu0 %v1174
      %v1188 = vpop.f32.mrf.mxu0
      %v1189 = vadd.f32 0.0, %v1188
      %v1190 = vpop.f32.mrf.mxu0
      %v1191 = vadd.f32 0.0, %v1190
      %1192 = vdwg.mxu0
      %v1194 = vsel %vm705, %v1165, 0
      %1196 = vmatpush.bf16.msra.mxu0 0
      %1197 = vmatpush.bf16.msra.mxu0 0
      %1198 = vmatpush.bf16.msra.mxu0 0
      %1199 = vmatpush.bf16.msra.mxu0 0
      %1200 = vmatpush.bf16.msra.mxu0 0
      %1201 = vmatpush.bf16.msra.mxu0 0
      %1202 = vmatpush.bf16.msra.mxu0 0
      %1203 = vmatpush.bf16.msra.mxu0 %v1194
      %1204 = vmatmul.bf16.gmra.mxu0 %v1174
      %v1205 = vpop.f32.mrf.mxu0
      %v1206 = vadd.f32 0.0, %v1205
      %v1207 = vpop.f32.mrf.mxu0
      %v1208 = vadd.f32 0.0, %v1207
      %1209 = vdwg.mxu0
      %v1210 = vld [vmem:[%s613] sm:$0xf]
      %v1211 = vld [vmem:[%s613 + $0x4] sm:$0xf]
      %v1212 = vunpack.c.l.bf16 %v1210
      %v1213 = vunpack.c.l.bf16 %v1211
      %v1214 = vsub.f32 %v1212, %v1189
      %v1215 = vsub.f32 %v1213, %v1191
      %s1216 = sadd.s32 0, 2
      %s1217 = smul.addr %s1216, 4
      %s1218 = scalar_lea.vmem %s613, %s1217
      %v1219 = vld [vmem:[%s1218] sm:$0xf]
      %v1220 = vld [vmem:[%s1218 + $0x4] sm:$0xf]
      %v1221 = vunpack.c.l.bf16 %v1219
      %v1222 = vunpack.c.l.bf16 %v1220
      %v1223 = vsub.f32 %v1221, %v1206
      %v1224 = vsub.f32 %v1222, %v1208
      %v1225 = vand.u32 2147483647, %v1214
      %v1226 = vand.u32 2147483647, %v1215
      %v1227 = vand.u32 2147483647, %v1223
      %v1228 = vand.u32 2147483647, %v1224
      %v1229 = vadd.f32 %v1225, %v1227
      %v1230 = vadd.f32 %v1226, %v1228
      %v1231 = vadd.f32 %v1229, 0.01
      %v1232 = vadd.f32 %v1230, 0.01
      %v1233 = vlog2.pop %v1231
      %v1234 = vmul.f32 %v1233, 0.6931472
      %v1235 = vlog2.pop %v1232
      %v1236 = vmul.f32 %v1235, 0.6931472
      %v1237 = vmul.f32 %v1234, 0.4
      %v1238 = vmul.f32 %v1236, 0.4
      %v1239 = vmul.f32 %v1237, 1.442695
      %v1240 = vpow.pop %v1239
      %v1241 = vmul.f32 %v1238, 1.442695
      %v1242 = vpow.pop %v1241
      %v1243 = vsel %vm644, %v1240, 0.0
      %v1244 = vsel %vm644, %v1242, 0.0
      %v1245 = vadd.f32 %v1243, %v1244
      %1246 = vadd.xlane.f32.xlu0 %v1245
      %v1247 = vpop.xlane.xlu0 %1246
      %v1248 = vrot.slane %v1247, 4
      %v1249 = vadd.f32 %v1247, %v1248
      %v1250 = vrot.slane %v1249, 2
      %v1251 = vadd.f32 %v1249, %v1250
      %v1252 = vrot.slane %v1251, 1
      %v1253 = vadd.f32 %v1251, %v1252
      %s1254 = vtos %v1253
      %s1255 = sadd.f32 %s1254, 0.0
      %vm1256 = vcmp.eq.s32.totalorder %v634, 8
      %v1257 = vstv %s1255
      %v1258 = vsel %vm1256, %v1257, 0.0
      %v1259 = vadd.f32 %v1125, %v1258
      %1260 = vst [vmem:[%s631] sm:$0x1] %v1259
      %p1261 = scmp.lt.s32.totalorder %s29, 1
      %s1262 = scalar_select %p1261, %s29, 1
      %s1263 = scalar_lea.vmem %s18, %s1262
      // Predicated region
      $region93: #{_lambda_.1} parent=91 // pred_check
        %p1264 = pneg %p445
      $region94: #{_lambda_.1} parent=91 // pred_check_branch
        %1266 = sbr.rel (%p1264) target = $region96
      $region95: #{_lambda_.1} parent=91 // pred_region
        _
      $region96: #{_lambda_.1} parent=91 // pred_fallthru
        _
    $region92: #{_lambda_.1} parent=5 // pred_fallthru
      _
    %p1267 = scmp.le.s32.totalorder 2, %s24
    // Predicated region
    $region97: #{_lambda_.1} parent=5 // pred_check
      %p1268 = pneg %p1267
    $region98: #{_lambda_.1} parent=5 // pred_check_branch
      %1270 = sbr.rel (%p1268) target = $region100
    $region99: #{_lambda_.1} parent=5 // pred_region
      %s1271 = ssub.s32 %s24, 2
      // Predicated region
      $region101: #{_lambda_.1} parent=99 // pred_check
        %p1272 = pneg %p451
      $region102: #{_lambda_.1} parent=99 // pred_check_branch
        %1274 = sbr.rel (%p1272) target = $region104
      $region103: #{_lambda_.1} parent=99 // pred_region
        %p1275 = scmp.lt.s32.totalorder %s30, 1
        %s1276 = scalar_select %p1275, %s30, 1
        %s1277 = scalar_lea.vmem %s18, %s1276
      $region104: #{_lambda_.1} parent=99 // pred_fallthru
        _
    $region100: #{_lambda_.1} parent=5 // pred_fallthru
      _
  $region6: #{_lambda_.1} parent=0 // loop_footer
    %s28 = sadd.s32 1, %s24
  $region7: #{_lambda_.1} parent=0 // loop_footer_branch
    %23 = sbr.rel target = $region3
  $region8: #{_lambda_.1} parent=0 // loop_exit
    _

</llo_original>
